<compile_context>
chip_gen: v5e
topology: v5e:2x2
jax: 0.10.0
libtpu: 0.0.40
codegen_flags: <defaults>
</compile_context>

<pallas_src>
import math
from types import SimpleNamespace

import jax
import jax.numpy as jnp
from jax.experimental import pallas as pl
from jax.experimental.pallas import tpu as pltpu

_MIB = 1024 * 1024


def _round_up(x, m):
    return ((x + m - 1) // m) * m


def _round_down(x, m):
    return (x // m) * m


def _vmem_capacity_bytes():
    """Physical VMEM per core; conservative (v7x-sized) fallback if query fails."""
    try:
        return int(pltpu.get_tpu_info().vmem_capacity_bytes)
    except Exception:
        return 64 * _MIB  # v7x has the smallest VMEM; safe on every generation.


# ----------------------------- Pallas kernel ------------------------------- #
def _point_decoder_kernel(x_ref, w1_ref, b1_ref, w2_ref, b2_ref, o_ref):
    # Layer 1 is recomputed per output tile.  At small B this is a tiny MXU
    # pass (x/w1/b1 block indices never change, so they are not re-DMA'd), and
    # it avoids cross-grid-iteration state so the O axis can be "parallel".
    x = x_ref[...].astype(jnp.bfloat16)        # cast folded into the kernel
    h = jnp.dot(x, w1_ref[...], preferred_element_type=jnp.float32)
    h = jnp.maximum(h + b1_ref[...], 0.0)      # f32 bias+ReLU on the VPU
    h = h.astype(jnp.bfloat16)                 # MXU-native operand for layer 2

    # Layer 2: only this output tile's slice of w2 / b2.
    o = jnp.dot(h, w2_ref[...], preferred_element_type=jnp.float32)
    o_ref[...] = (o + b2_ref[...]).astype(o_ref.dtype)


def point_decoder_pallas(feats, w1, b1, w2, b2):
    """Fused MLP: ReLU(feats @ w1 + b1) @ w2 + b2  ->  [B, n_points*3] (f32).

    feats: [B, 512] f32, w1: [512, 1024] bf16, b1: [1, 1024] f32,
    w2: [1024, O] bf16, b2: [1, O] f32.
    """
    B, F = feats.shape
    H = w1.shape[1]
    O = w2.shape[1]

    # ---- Generation-aware output tiling (kernel is w2-DMA bound) -----------
    vmem_cap = _vmem_capacity_bytes()
    # Spend ~1/4 of physical VMEM on the double-buffered bf16 w2 stream:
    #   2 buffers * H * TN * 2 bytes  ~=  vmem_cap / 4
    #   v7x (64 MiB)      -> TN cap 4096 (16 MiB of w2 buffers)
    #   v5e/v6e (128 MiB) -> TN cap 8192 (32 MiB of w2 buffers)
    tn_cap = max(1024, min(8192, _round_down(vmem_cap // 4 // (4 * H), 128)))

    if O < 256:
        TN = O                      # too narrow to split into >=128-wide tiles
    else:
        # Even number of roughly equal, 128-aligned tiles so v7x's two
        # TensorCores split the w2 stream evenly (grid >= 2 even for O<=cap).
        n_tiles = 2 * pl.cdiv(O, 2 * tn_cap)
        TN = _round_up(pl.cdiv(O, n_tiles), 128)
    grid = (pl.cdiv(O, TN),)
    num_tiles = grid[0]

    # Explicit scoped-VMEM limit: half of physical leaves ample headroom over
    # the w2-buffer budget + residents on every generation (and is well above
    # v5e's 16 MiB default scoped window).
    vmem_limit = int(min(vmem_cap // 2, 100 * _MIB))

    cost = pl.CostEstimate(
        # Layer 1 is recomputed once per output tile.
        flops=2 * B * (num_tiles * F * H + H * O),
        transcendentals=0,
        bytes_accessed=int(
            feats.size * feats.dtype.itemsize
            + w1.size * w1.dtype.itemsize + w2.size * w2.dtype.itemsize
            + b1.size * b1.dtype.itemsize + b2.size * b2.dtype.itemsize
            + B * O * 4),
    )

    return pl.pallas_call(
        _point_decoder_kernel,
        out_shape=jax.ShapeDtypeStruct((B, O), jnp.float32),
        grid=grid,
        in_specs=[
            pl.BlockSpec((B, F), lambda j: (0, 0)),    # resident across grid
            pl.BlockSpec((F, H), lambda j: (0, 0)),    # resident across grid
            pl.BlockSpec((1, H), lambda j: (0, 0)),    # resident across grid
            pl.BlockSpec((H, TN), lambda j: (0, j)),   # streamed, double-buffered
            pl.BlockSpec((1, TN), lambda j: (0, j)),
        ],
        out_specs=pl.BlockSpec((B, TN), lambda j: (0, j)),
        compiler_params=pltpu.CompilerParams(
            dimension_semantics=("parallel",),
            vmem_limit_bytes=vmem_limit),
        cost_estimate=cost,
    )(feats, w1, b1, w2, b2)


# --------------------------- Module equivalent ------------------------------ #
class SingleViewto3DJax:
    """JAX/Pallas port of SingleViewto3D for args.type == 'point', load_feat=True."""

    def __init__(self, args, key):
        assert args.load_feat, "encoder path (torchvision ResNet) not ported"
        assert args.type == "point"
        self.n_point = args.n_points

        in1, out1 = 512, 1024
        in2, out2 = 1024, self.n_point * 3
        k1, k2, k3, k4 = jax.random.split(key, 4)

        # torch.nn.Linear default init: uniform(-1/sqrt(fan_in), 1/sqrt(fan_in)).
        lim1 = 1.0 / math.sqrt(in1)
        lim2 = 1.0 / math.sqrt(in2)
        # Weights stored in bf16 (halves HBM traffic; MXU-native). Biases kept
        # f32 and pre-shaped 2-D so no per-call reshape is needed.
        self.w1 = jax.random.uniform(k1, (in1, out1), jnp.float32, -lim1, lim1
                                     ).astype(jnp.bfloat16)
        self.b1 = jax.random.uniform(k2, (1, out1), jnp.float32, -lim1, lim1)
        self.w2 = jax.random.uniform(k3, (in2, out2), jnp.float32, -lim2, lim2
                                     ).astype(jnp.bfloat16)
        self.b2 = jax.random.uniform(k4, (1, out2), jnp.float32, -lim2, lim2)

    def forward(self, images, args):
        if args.load_feat:
            encoded_feat = images  # [B, 512]
        else:
            # TODO(synk): pretrained ResNet encoder + Normalize has no clean Pallas port.
            raise NotImplementedError

        if args.type == "point":
            flat = point_decoder_pallas(
                encoded_feat, self.w1, self.b1, self.w2, self.b2)  # [B, n_point*3]
            return flat.reshape(-1, self.n_point, 3)               # [B, n_point, 3]
        else:
            # TODO(synk): 'vox' (ConvTranspose3d stack) and 'mesh' (pytorch3d) branches.
            raise NotImplementedError


# ------------------------------- Reference ---------------------------------- #
def _reference(feats, model, n_points):
    """Plain-JAX reference using the same bf16 operand precision as the kernel."""
    x = feats.astype(jnp.bfloat16).astype(jnp.float32)
    w1 = model.w1.astype(jnp.float32)
    w2 = model.w2.astype(jnp.float32)
    h = jnp.maximum(x @ w1 + model.b1, 0.0)
    h = h.astype(jnp.bfloat16).astype(jnp.float32)
    return (h @ w2 + model.b2).reshape(-1, n_points, 3)


# --------------------------------- Main ------------------------------------- #
if __name__ == "__main__":
    key = jax.random.PRNGKey(0)
    k_model, k_data, k_model2, k_data2 = jax.random.split(key, 4)

    # --- small demo config (O=384 -> two balanced-ish tiles 256+128) ---
    args = SimpleNamespace(device="tpu", load_feat=True, type="point",
                           n_points=128, batch_size=2)
    model = SingleViewto3DJax(args, k_model)
    feats = jax.random.normal(k_data, (args.batch_size, 512), jnp.float32)

    out = model.forward(feats, args)
    out = jax.block_until_ready(out)
    ref = _reference(feats, model, args.n_points)
    assert out.shape == (args.batch_size, args.n_points, 3), out.shape
    assert jnp.allclose(out, ref, atol=2e-2, rtol=2e-2), "kernel mismatch (small)"

    # --- multi-tile config (O=3072 -> balanced 1536+1536 tiles across grid) ---
    args2 = SimpleNamespace(device="tpu", load_feat=True, type="point",
                            n_points=1024, batch_size=2)
    model2 = SingleViewto3DJax(args2, k_model2)
    feats2 = jax.random.normal(k_data2, (args2.batch_size, 512), jnp.float32)

    out2 = model2.forward(feats2, args2)
    out2 = jax.block_until_ready(out2)
    ref2 = _reference(feats2, model2, args2.n_points)
    assert out2.shape == (args2.batch_size, args2.n_points, 3), out2.shape
    assert jnp.allclose(out2, ref2, atol=2e-2, rtol=2e-2), "kernel mismatch (tiled)"

    print("KERNEL_OK")
</pallas_src>

<mosaic_0001>
module attributes {stable_mosaic.version = 11 : i64} {
  func.func @_point_decoder_kernel(%arg0: i32, %arg1: memref<2x512xf32, #tpu.memory_space<vmem>>, %arg2: memref<512x1024xbf16, #tpu.memory_space<vmem>>, %arg3: memref<1x1024xf32, #tpu.memory_space<vmem>>, %arg4: memref<1024x256xbf16, #tpu.memory_space<vmem>>, %arg5: memref<1x256xf32, #tpu.memory_space<vmem>>, %arg6: memref<2x256xf32, #tpu.memory_space<vmem>>) attributes {dimension_semantics = [#tpu.dimension_semantics<parallel>], iteration_bounds = array<i64: 2>, scalar_prefetch = 0 : i64, scratch_operands = 0 : i64, tpu.core_type = #tpu.core_type<tc>, window_params = [{pipeline_mode = #tpu.pipeline_mode<synchronous>, transform_indices = @transform_0, window_bounds = array<i64: 2, 512>}, {pipeline_mode = #tpu.pipeline_mode<synchronous>, transform_indices = @transform_1, window_bounds = array<i64: 512, 1024>}, {pipeline_mode = #tpu.pipeline_mode<synchronous>, transform_indices = @transform_2, window_bounds = array<i64: 1, 1024>}, {transform_indices = @transform_3, window_bounds = array<i64: 1024, 256>}, {transform_indices = @transform_4, window_bounds = array<i64: 1, 256>}, {transform_indices = @transform_5, window_bounds = array<i64: 2, 256>}]} {
    %c0 = arith.constant 0 : index
    %c0_0 = arith.constant 0 : index
    %0 = vector.load %arg1[%c0, %c0_0] : memref<2x512xf32, #tpu.memory_space<vmem>>, vector<2x512xf32>
    %1 = arith.truncf %0 : vector<2x512xf32> to vector<2x512xbf16>
    %c0_1 = arith.constant 0 : index
    %c0_2 = arith.constant 0 : index
    %2 = vector.load %arg2[%c0_1, %c0_2] : memref<512x1024xbf16, #tpu.memory_space<vmem>>, vector<512x1024xbf16>
    %cst = arith.constant dense<0.000000e+00> : vector<2x1024xf32>
    %3 = tpu.matmul %1, %2, %cst {dimension_numbers = #tpu.dot_dimension_numbers<[1], [0], [0], [1], [0, 0, 1, 1], [], []>} : vector<2x512xbf16>, vector<512x1024xbf16>, vector<2x1024xf32> -> vector<2x1024xf32>
    %c0_3 = arith.constant 0 : index
    %c0_4 = arith.constant 0 : index
    %4 = vector.load %arg3[%c0_3, %c0_4] : memref<1x1024xf32, #tpu.memory_space<vmem>>, vector<1x1024xf32>
    %5 = vector.broadcast %4 : vector<1x1024xf32> to vector<2x1024xf32>
    %6 = arith.addf %3, %5 : vector<2x1024xf32>
    %cst_5 = arith.constant 0.000000e+00 : f32
    %7 = vector.broadcast %cst_5 : f32 to vector<2x1024xf32>
    %8 = arith.maximumf %6, %7 : vector<2x1024xf32>
    %9 = arith.truncf %8 : vector<2x1024xf32> to vector<2x1024xbf16>
    %c0_6 = arith.constant 0 : index
    %c0_7 = arith.constant 0 : index
    %10 = vector.load %arg4[%c0_6, %c0_7] : memref<1024x256xbf16, #tpu.memory_space<vmem>>, vector<1024x256xbf16>
    %cst_8 = arith.constant dense<0.000000e+00> : vector<2x256xf32>
    %11 = tpu.matmul %9, %10, %cst_8 {dimension_numbers = #tpu.dot_dimension_numbers<[1], [0], [0], [1], [0, 0, 1, 1], [], []>} : vector<2x1024xbf16>, vector<1024x256xbf16>, vector<2x256xf32> -> vector<2x256xf32>
    %c0_9 = arith.constant 0 : index
    %c0_10 = arith.constant 0 : index
    %12 = vector.load %arg5[%c0_9, %c0_10] : memref<1x256xf32, #tpu.memory_space<vmem>>, vector<1x256xf32>
    %13 = vector.broadcast %12 : vector<1x256xf32> to vector<2x256xf32>
    %14 = arith.addf %11, %13 : vector<2x256xf32>
    %c0_11 = arith.constant 0 : index
    %c0_12 = arith.constant 0 : index
    %15 = vector.load %arg6[%c0_11, %c0_12] : memref<2x256xf32, #tpu.memory_space<vmem>>, vector<2x256xf32>
    tpu.vector_store %arg6[%c0_11, %c0_12], %14 {strides = array<i32>} : memref<2x256xf32, #tpu.memory_space<vmem>>, vector<2x256xf32>,
    return
  }
  func.func @transform_0(%arg0: i32) -> (i32, i32) {
    %c0_i32 = arith.constant 0 : i32
    %c0_i32_0 = arith.constant 0 : i32
    %c0_i32_1 = arith.constant 0 : i32
    return %c0_i32, %c0_i32_0 : i32, i32
  }
  func.func @transform_1(%arg0: i32) -> (i32, i32) {
    %c0_i32 = arith.constant 0 : i32
    %c0_i32_0 = arith.constant 0 : i32
    %c0_i32_1 = arith.constant 0 : i32
    return %c0_i32, %c0_i32_0 : i32, i32
  }
  func.func @transform_2(%arg0: i32) -> (i32, i32) {
    %c0_i32 = arith.constant 0 : i32
    %c0_i32_0 = arith.constant 0 : i32
    %c0_i32_1 = arith.constant 0 : i32
    return %c0_i32, %c0_i32_0 : i32, i32
  }
  func.func @transform_3(%arg0: i32) -> (i32, i32) {
    %c0_i32 = arith.constant 0 : i32
    %c0_i32_0 = arith.constant 0 : i32
    return %c0_i32, %arg0 : i32, i32
  }
  func.func @transform_4(%arg0: i32) -> (i32, i32) {
    %c0_i32 = arith.constant 0 : i32
    %c0_i32_0 = arith.constant 0 : i32
    return %c0_i32, %arg0 : i32, i32
  }
  func.func @transform_5(%arg0: i32) -> (i32, i32) {
    %c0_i32 = arith.constant 0 : i32
    %c0_i32_0 = arith.constant 0 : i32
    return %c0_i32, %arg0 : i32, i32
  }
}

</mosaic_0001>

<llo_original>
// kernel: tpu_custom_call.1
$region0: #{tpu_custom_call.1}
  #allocation0 [shape = 'u32[]', space=smem, size = 0x4, offset = 0x4, fixed_abs, tag = 'smem constant byte address 0x4 - core index']
  #allocation1 [shape = 'u32[72,128]{1,0:T(1,128)}', space=vmem, size = 0x9000, scoped, tag = 'internal scratch']
  %s0 = inlined_call_operand.hbm [shape: f32[2,512], index: 0, kind: input, shape index: {}]
  %s1 = inlined_call_operand.hbm [shape: bf16[512,1024], index: 1, kind: input, shape index: {}]
  %s2 = inlined_call_operand.hbm [shape: f32[1,1024], index: 2, kind: input, shape index: {}]
  %s3 = inlined_call_operand.hbm [shape: bf16[1024,384], index: 3, kind: input, shape index: {}]
  %s4 = inlined_call_operand.vmem [shape: f32[1,384], index: 4, kind: input, shape index: {}]
  %s5 = inlined_call_operand.hbm [shape: f32[2,384], index: 5, kind: output, shape index: {}]
  %s6 = sld [smem:[#allocation0]]
  $region69: #{tpu_custom_call.1} parent=0
    _
  %s8 = ssub.s32 1, %s6
  %s9 = scalar_select 0, %s8, %s6
  $region1: #{tpu_custom_call.1} parent=0
    #allocation2 [shape = 'u8[4096]{0}', space=vmem, size = 0x1000, scoped, tag = 'input window, operand 0, single buffered']
    #allocation3 [shape = 's32[2]{0}', space=sflag, size = 0x8, scoped, tag = 'scoped memory for tpu_custom_call.1']
    #allocation4 [shape = 's32[2]{0}', space=sflag, size = 0x8, scoped, tag = 'scoped memory for tpu_custom_call.1']
    #allocation5 [shape = 'u8[1048576]{0}', space=vmem, size = 0x100000, scoped, tag = 'input window, operand 1, single buffered']
    #allocation6 [shape = 's32[1]{0}', space=sflag, size = 0x4, scoped, tag = 'scoped memory for tpu_custom_call.1']
    #allocation7 [shape = 'u8[4096]{0}', space=vmem, size = 0x1000, scoped, tag = 'input window, operand 2, single buffered']
    #allocation8 [shape = 'u8[1048576]{0}', space=vmem, size = 0x100000, scoped, tag = 'input window, operand 3']
    #allocation9 [shape = 's32[2]{0}', space=sflag, size = 0x8, scoped, tag = 'scoped memory for tpu_custom_call.1']
    #allocation10 [shape = 'u8[4096]{0}', space=vmem, size = 0x1000, scoped, tag = 'output window, operand 0']
    %10 = vsyncpa [#allocation3], 0
    %11 = vsyncpa [#allocation6], 0
    %12 = vsyncpa [#allocation9], 0
    %s13 = scalar_lea.sflag [#allocation9], 1
    %14 = vsyncpa %s13, 0
    %15 = vsyncpa [#allocation4], 0
    %s16 = scalar_lea.sflag [#allocation4], 1
    %17 = vsyncpa %s16, 0
    loop: start=0, step=1, limit=4
    $region2: #{tpu_custom_call.1} parent=1 // loop_pre_header
      _
    $region3: #{tpu_custom_call.1} parent=1 // loop_header
      %s19 = sphi 0, %s23
      %p20 = scmp.ge.s32.totalorder %s19, 4
      %s27 = sphi 0, %s27
      %s29 = sphi 0, %s27
      %s30 = sphi 0, %s29
      %s44 = sphi 0, %s30
      %s48 = sphi 0, %s48
      %s50 = sphi 0, %s48
      %s51 = sphi 0, %s50
      %s65 = sphi 0, %s51
      %s69 = sphi 0, %s69
      %s71 = sphi 0, %s69
      %s72 = sphi 0, %s71
      %s86 = sphi 0, %s72
      %s92 = sphi 0, %s94
      %s95 = sphi 0, %s92
      %s96 = sphi 0, %s95
      %s112 = sphi 0, %s96
      %s118 = sphi 0, %s120
      %s121 = sphi 0, %s118
      %s122 = sphi 0, %s121
      %s138 = sphi 0, %s122
      %s144 = sphi 0, %s146
      %s147 = sphi 0, %s144
      %s148 = sphi 0, %s147
      %s164 = sphi 0, %s148
    $region4: #{tpu_custom_call.1} parent=1 // loop_header_branch
      %22 = sbr.rel (%p20) target = $region8
    $region5: #{tpu_custom_call.1} parent=1 // loop_body
      %s24 = ssub.s32 %s19, 1
      %s25 = ssub.s32 %s19, 2
      %s26 = sadd.s32 %s19, 1
      %s28 = sadd.s32 %s27, 1
      %p31 = scmp.eq.s32.totalorder %s19, 1
      %p32 = scmp.ne.s32.totalorder %s27, %s29
      %p33 = scmp.eq.s32.totalorder %s19, 0
      %p34 = por %p32, %p33
      %p35 = scmp.ne.s32.totalorder %s27, %s29
      %p36 = scmp.eq.s32.totalorder %s24, 1
      %p37 = por %p35, %p36
      %p38 = scmp.ne.s32.totalorder %s29, %s30
      %p39 = scmp.eq.s32.totalorder %s24, 0
      %p40 = por %p38, %p39
      %p41 = scmp.ne.s32.totalorder %s29, %s30
      %p42 = scmp.eq.s32.totalorder %s25, 1
      %p43 = por %p41, %p42
      %p45 = scmp.ne.s32.totalorder %s30, %s44
      %p46 = scmp.eq.s32.totalorder %s25, 0
      %p47 = por %p45, %p46
      %s49 = sadd.s32 %s48, 1
      %p52 = scmp.eq.s32.totalorder %s19, 1
      %p53 = scmp.ne.s32.totalorder %s48, %s50
      %p54 = scmp.eq.s32.totalorder %s19, 0
      %p55 = por %p53, %p54
      %p56 = scmp.ne.s32.totalorder %s48, %s50
      %p57 = scmp.eq.s32.totalorder %s24, 1
      %p58 = por %p56, %p57
      %p59 = scmp.ne.s32.totalorder %s50, %s51
      %p60 = scmp.eq.s32.totalorder %s24, 0
      %p61 = por %p59, %p60
      %p62 = scmp.ne.s32.totalorder %s50, %s51
      %p63 = scmp.eq.s32.totalorder %s25, 1
      %p64 = por %p62, %p63
      %p66 = scmp.ne.s32.totalorder %s51, %s65
      %p67 = scmp.eq.s32.totalorder %s25, 0
      %p68 = por %p66, %p67
      %s70 = sadd.s32 %s69, 1
      %p73 = scmp.eq.s32.totalorder %s19, 1
      %p74 = scmp.ne.s32.totalorder %s69, %s71
      %p75 = scmp.eq.s32.totalorder %s19, 0
      %p76 = por %p74, %p75
      %p77 = scmp.ne.s32.totalorder %s69, %s71
      %p78 = scmp.eq.s32.totalorder %s24, 1
      %p79 = por %p77, %p78
      %p80 = scmp.ne.s32.totalorder %s71, %s72
      %p81 = scmp.eq.s32.totalorder %s24, 0
      %p82 = por %p80, %p81
      %p83 = scmp.ne.s32.totalorder %s71, %s72
      %p84 = scmp.eq.s32.totalorder %s25, 1
      %p85 = por %p83, %p84
      %p87 = scmp.ne.s32.totalorder %s72, %s86
      %p88 = scmp.eq.s32.totalorder %s25, 0
      %p89 = por %p87, %p88
      %s90 = ssub.s32 %s19, %s26
      %p91 = scmp.eq.s32.totalorder %s90, 0
      %s93 = sadd.s32 %s92, 1
      %s94 = scalar_select %p91, %s92, %s93
      %p97 = pneg %p91
      %p98 = scmp.eq.s32.totalorder %s19, 1
      %p99 = por %p97, %p98
      %p100 = scmp.ne.s32.totalorder %s92, %s95
      %p101 = scmp.eq.s32.totalorder %s19, 0
      %p102 = por %p100, %p101
      %p103 = scmp.ne.s32.totalorder %s92, %s95
      %p104 = scmp.eq.s32.totalorder %s24, 1
      %p105 = por %p103, %p104
      %p106 = scmp.ne.s32.totalorder %s95, %s96
      %p107 = scmp.eq.s32.totalorder %s24, 0
      %p108 = por %p106, %p107
      %p109 = scmp.ne.s32.totalorder %s95, %s96
      %p110 = scmp.eq.s32.totalorder %s25, 1
      %p111 = por %p109, %p110
      %p113 = scmp.ne.s32.totalorder %s96, %s112
      %p114 = scmp.eq.s32.totalorder %s25, 0
      %p115 = por %p113, %p114
      %s116 = ssub.s32 %s19, %s26
      %p117 = scmp.eq.s32.totalorder %s116, 0
      %s119 = sadd.s32 %s118, 1
      %s120 = scalar_select %p117, %s118, %s119
      %p123 = pneg %p117
      %p124 = scmp.eq.s32.totalorder %s19, 1
      %p125 = por %p123, %p124
      %p126 = scmp.ne.s32.totalorder %s118, %s121
      %p127 = scmp.eq.s32.totalorder %s19, 0
      %p128 = por %p126, %p127
      %p129 = scmp.ne.s32.totalorder %s118, %s121
      %p130 = scmp.eq.s32.totalorder %s24, 1
      %p131 = por %p129, %p130
      %p132 = scmp.ne.s32.totalorder %s121, %s122
      %p133 = scmp.eq.s32.totalorder %s24, 0
      %p134 = por %p132, %p133
      %p135 = scmp.ne.s32.totalorder %s121, %s122
      %p136 = scmp.eq.s32.totalorder %s25, 1
      %p137 = por %p135, %p136
      %p139 = scmp.ne.s32.totalorder %s122, %s138
      %p140 = scmp.eq.s32.totalorder %s25, 0
      %p141 = por %p139, %p140
      %s142 = ssub.s32 %s19, %s26
      %p143 = scmp.eq.s32.totalorder %s142, 0
      %s145 = sadd.s32 %s144, 1
      %s146 = scalar_select %p143, %s144, %s145
      %p149 = pneg %p143
      %p150 = scmp.eq.s32.totalorder %s19, 1
      %p151 = por %p149, %p150
      %p152 = scmp.ne.s32.totalorder %s144, %s147
      %p153 = scmp.eq.s32.totalorder %s19, 0
      %p154 = por %p152, %p153
      %p155 = scmp.ne.s32.totalorder %s144, %s147
      %p156 = scmp.eq.s32.totalorder %s24, 1
      %p157 = por %p155, %p156
      %p158 = scmp.ne.s32.totalorder %s147, %s148
      %p159 = scmp.eq.s32.totalorder %s24, 0
      %p160 = por %p158, %p159
      %p161 = scmp.ne.s32.totalorder %s147, %s148
      %p162 = scmp.eq.s32.totalorder %s25, 1
      %p163 = por %p161, %p162
      %p165 = scmp.ne.s32.totalorder %s148, %s164
      %p166 = scmp.eq.s32.totalorder %s25, 0
      %p167 = por %p165, %p166
      %p168 = scmp.le.s32.totalorder 1, %s19
      %p169 = scmp.lt.s32.totalorder %s19, 3
      %p170 = pnand %p168, %p169
      %p171 = pneg %p170
      // Predicated region
      $region9: #{tpu_custom_call.1} parent=5 // pred_check
        _
      $region10: #{tpu_custom_call.1} parent=5 // pred_check_branch
        %173 = sbr.rel (%p170) target = $region12
      $region11: #{tpu_custom_call.1} parent=5 // pred_region
        %s174 = ssub.s32 %s19, 1
        // Predicated region
        $region13: #{tpu_custom_call.1} parent=11 // pred_check
          %p175 = pneg %p40
        $region14: #{tpu_custom_call.1} parent=11 // pred_check_branch
          %177 = sbr.rel (%p175) target = $region16
        $region15: #{tpu_custom_call.1} parent=11 // pred_region
          %179 = vsyncadd [#allocation3], 0
          %s181 = sshll.u32 %s0, 4
          %s182 = int_to_ptr.hbm [resolvable:$true] %s181
          %s183 = sshll.u32 [#allocation2], 4
          %s184 = int_to_ptr.vmem [resolvable:$true] %s183
          %186 = dma.hbm_to_vmem [thread:$0]  %s182, 128, %s184, [#allocation3]
        $region16: #{tpu_custom_call.1} parent=11 // pred_fallthru
          _
        // Predicated region
        $region17: #{tpu_custom_call.1} parent=11 // pred_check
          %p187 = pneg %p61
        $region18: #{tpu_custom_call.1} parent=11 // pred_check_branch
          %189 = sbr.rel (%p187) target = $region20
        $region19: #{tpu_custom_call.1} parent=11 // pred_region
          %191 = vsyncadd [#allocation6], 0
          %s192 = sshll.u32 %s1, 4
          %s193 = int_to_ptr.hbm [resolvable:$true] %s192
          %s194 = sshll.u32 [#allocation5], 4
          %s195 = int_to_ptr.vmem [resolvable:$true] %s194
          %200 = dma.hbm_to_vmem [thread:$0]  %s193, 32768, %s195, [#allocation6], 512, 512, 32
        $region20: #{tpu_custom_call.1} parent=11 // pred_fallthru
          _
        // Predicated region
        $region21: #{tpu_custom_call.1} parent=11 // pred_check
          %p201 = pneg %p82
        $region22: #{tpu_custom_call.1} parent=11 // pred_check_branch
          %203 = sbr.rel (%p201) target = $region24
        $region23: #{tpu_custom_call.1} parent=11 // pred_region
          %205 = vsyncadd [#allocation6], 0
          %s207 = sshll.u32 %s2, 4
          %s208 = int_to_ptr.hbm [resolvable:$true] %s207
          %s209 = sshll.u32 [#allocation7], 4
          %s210 = int_to_ptr.vmem [resolvable:$true] %s209
          %212 = dma.hbm_to_vmem [thread:$0]  %s208, 128, %s210, [#allocation6]
        $region24: #{tpu_custom_call.1} parent=11 // pred_fallthru
          _
      $region12: #{tpu_custom_call.1} parent=5 // pred_fallthru
        _
      %p213 = scmp.lt.s32.totalorder %s19, 2
      // Predicated region
      $region25: #{tpu_custom_call.1} parent=5 // pred_check
        %p214 = pneg %p213
      $region26: #{tpu_custom_call.1} parent=5 // pred_check_branch
        %216 = sbr.rel (%p214) target = $region28
      $region27: #{tpu_custom_call.1} parent=5 // pred_region
        // Predicated region
        $region29: #{tpu_custom_call.1} parent=27 // pred_check
          %p217 = pneg %p102
        $region30: #{tpu_custom_call.1} parent=27 // pred_check_branch
          %219 = sbr.rel (%p217) target = $region32
        $region31: #{tpu_custom_call.1} parent=27 // pred_region
          %s220 = sand.u32 %s92, 1
          %s221 = scalar_lea.sflag [#allocation9], %s220
          %s222 = sand.u32 %s92, 1
          %s223 = smul.addr %s222, 1024
          %s224 = scalar_lea.vmem [#allocation8], %s223
          %s225 = smul.u32 2, %s19
          %s226 = ssub.s32 3, %s225
          %p227 = scmp.lt.s32.totalorder %s226, 2
          %s228 = scalar_select %p227, %s226, 2
          %s229 = smul.u32 512, %s228
          %s230 = ssub.s32 1024, %s229
          %s231 = sshll.u32 %s230, 4
          %232 = vsyncadd %s221, %s231
          %p233 = scmp.ne.s32.totalorder 0, %s229
          %s234 = smul.addr %s225, 4
          %s235 = scalar_lea.hbm %s3, %s234
          %s236 = smul.u32 %s228, 4
          %s237 = smul.u32 %s236, 128
          %s238 = sshll.u32 %s235, 4
          %s239 = int_to_ptr.hbm [resolvable:$true] %s238
          %s240 = sshll.u32 %s224, 4
          %s241 = int_to_ptr.vmem [resolvable:$true] %s240
          %s242 = sshll.u32 %s237, 4
          %246 = dma.hbm_to_vmem [thread:$0]  (%p233), %s239, %s242, %s241, %s221, 192, 128, %s236
        $region32: #{tpu_custom_call.1} parent=27 // pred_fallthru
          _
        // Predicated region
        $region33: #{tpu_custom_call.1} parent=27 // pred_check
          %p247 = pneg %p128
        $region34: #{tpu_custom_call.1} parent=27 // pred_check_branch
          %249 = sbr.rel (%p247) target = $region36
        $region35: #{tpu_custom_call.1} parent=27 // pred_region
          %s250 = smul.u32 2, %s19
          %s251 = ssub.s32 3, %s250
          %p252 = scmp.lt.s32.totalorder %s251, 2
          %s253 = scalar_select %p252, %s251, 2
          %p254 = scmp.lt.s32.totalorder %s250, 2
          %s255 = scalar_select %p254, %s250, 2
          %s256 = scalar_lea.vmem %s4, %s255
          %s257 = smul.u32 2, %s19
          %s258 = ssub.s32 3, %s257
          %p259 = scmp.lt.s32.totalorder %s258, 2
          %s260 = scalar_select %p259, %s258, 2
        $region36: #{tpu_custom_call.1} parent=27 // pred_fallthru
          _
      $region28: #{tpu_custom_call.1} parent=5 // pred_fallthru
        _
      %p261 = scmp.le.s32.totalorder 1, %s19
      %p262 = scmp.lt.s32.totalorder %s19, 3
      %p263 = pnand %p261, %p262
      %p264 = pneg %p263
      // Predicated region
      $region37: #{tpu_custom_call.1} parent=5 // pred_check
        _
      $region38: #{tpu_custom_call.1} parent=5 // pred_check_branch
        %266 = sbr.rel (%p263) target = $region40
      $region39: #{tpu_custom_call.1} parent=5 // pred_region
        %s267 = ssub.s32 %s19, 1
        // Predicated region
        $region41: #{tpu_custom_call.1} parent=39 // pred_check
          %p268 = pneg %p40
        $region42: #{tpu_custom_call.1} parent=39 // pred_check_branch
          %270 = sbr.rel (%p268) target = $region44
        $region43: #{tpu_custom_call.1} parent=39 // pred_region
          %272 = dma.done [#allocation3], 128
        $region44: #{tpu_custom_call.1} parent=39 // pred_fallthru
          _
        // Predicated region
        $region45: #{tpu_custom_call.1} parent=39 // pred_check
          %p273 = pneg %p61
        $region46: #{tpu_custom_call.1} parent=39 // pred_check_branch
          %275 = sbr.rel (%p273) target = $region48
        $region47: #{tpu_custom_call.1} parent=39 // pred_region
          %277 = dma.done [#allocation6], 32768
        $region48: #{tpu_custom_call.1} parent=39 // pred_fallthru
          _
        // Predicated region
        $region49: #{tpu_custom_call.1} parent=39 // pred_check
          %p278 = pneg %p82
        $region50: #{tpu_custom_call.1} parent=39 // pred_check_branch
          %280 = sbr.rel (%p278) target = $region52
        $region51: #{tpu_custom_call.1} parent=39 // pred_region
          %282 = dma.done [#allocation6], 128
        $region52: #{tpu_custom_call.1} parent=39 // pred_fallthru
          _
        %s283 = sand.u32 %s95, 1
        %s284 = scalar_lea.sflag [#allocation9], %s283
        %s285 = sand.u32 %s95, 1
        %s286 = smul.addr %s285, 1024
        %s287 = scalar_lea.vmem [#allocation8], %s286
        // Predicated region
        $region53: #{tpu_custom_call.1} parent=39 // pred_check
          %p288 = pneg %p108
        $region54: #{tpu_custom_call.1} parent=39 // pred_check_branch
          %290 = sbr.rel (%p288) target = $region56
        $region55: #{tpu_custom_call.1} parent=39 // pred_region
          %292 = dma.done %s284, 16384
        $region56: #{tpu_custom_call.1} parent=39 // pred_fallthru
          _
        %p293 = pneg %p40
        %p294 = pneg %p37
        %p295 = pneg %p61
        %p296 = pneg %p58
        %p297 = pneg %p82
        %p298 = pneg %p79
        %s299 = sand.u32 %s95, 1
        %s300 = scalar_lea.sflag [#allocation9], %s299
        %s301 = sand.u32 %s95, 1
        %s302 = smul.addr %s301, 1024
        %s303 = scalar_lea.vmem [#allocation8], %s302
        %p304 = pneg %p108
        %p305 = pneg %p105
        %s306 = smul.u32 2, %s24
        %s307 = ssub.s32 3, %s306
        %p308 = scmp.lt.s32.totalorder %s307, 2
        %s309 = scalar_select %p308, %s307, 2
        %p310 = scmp.lt.s32.totalorder %s306, 2
        %s311 = scalar_select %p310, %s306, 2
        %s312 = scalar_lea.vmem %s4, %s311
        %p313 = pneg %p134
        %p314 = pneg %p131
        %p315 = pneg %p160
        %p316 = pneg %p157
        %s317 = sand.u32 %s147, 1
        %s318 = scalar_lea.sflag [#allocation4], %s317
        %s319 = sand.u32 %s147, 1
        %s320 = smul.addr %s319, 4
        %s321 = scalar_lea.vmem [#allocation10], %s320
        %s322 = smul.u32 2, %s24
        %s323 = ssub.s32 3, %s322
        %p324 = scmp.lt.s32.totalorder %s323, 2
        %s325 = scalar_select %p324, %s323, 2
        %s326 = smul.u32 512, %s325
        %s327 = smul.u32 2, %s24
        %s328 = ssub.s32 3, %s327
        %p329 = scmp.lt.s32.totalorder %s328, 2
        %s330 = scalar_select %p329, %s328, 2
        %p331 = scmp.lt.s32.totalorder %s327, 2
        %s332 = scalar_select %p331, %s327, 2
        %s333 = scalar_lea.vmem %s4, %s332
        %s334 = smul.u32 2, %s24
        %s335 = ssub.s32 3, %s334
        %p336 = scmp.lt.s32.totalorder %s335, 2
        %s337 = scalar_select %p336, %s335, 2
        %s338 = smul.u32 2, %s24
        %s339 = ssub.s32 3, %s338
        %p340 = scmp.lt.s32.totalorder %s339, 2
        %s341 = scalar_select %p340, %s339, 2
        %s342 = smul.u32 2, %s341
        %v343 = vld [vmem:[#allocation2] sm:$0xff]
        %345 = vst [vmem:[#allocation1] ss:$4 sm:$0xff] %v343
        %v346 = vld.sshfl [vmem:[#allocation1] sm:$0xff pattern:$0x73625140]
        %v347 = vld.sshfl [vmem:[#allocation1 + $0x8] sm:$0xff pattern:$0x73625140]
        %v348 = vld.sshfl [vmem:[#allocation1 + $0x10] sm:$0xff pattern:$0x73625140]
        %v349 = vld.sshfl [vmem:[#allocation1 + $0x18] sm:$0xff pattern:$0x73625140]
        %v354 = vpack.c.bf16 %v346, %v346
        %v355 = vpack.c.bf16 %v347, %v347
        %v356 = vpack.c.bf16 %v348, %v348
        %v357 = vpack.c.bf16 %v349, %v349
        %v358 = vld [vmem:[#allocation5] sm:$0xff]
        %v359 = vld [vmem:[#allocation5 + $0x8] sm:$0xff]
        %v360 = vld [vmem:[#allocation5 + $0x10] sm:$0xff]
        %v361 = vld [vmem:[#allocation5 + $0x18] sm:$0xff]
        %v362 = vld [vmem:[#allocation5 + $0x20] sm:$0xff]
        %v363 = vld [vmem:[#allocation5 + $0x28] sm:$0xff]
        %v364 = vld [vmem:[#allocation5 + $0x30] sm:$0xff]
        %v365 = vld [vmem:[#allocation5 + $0x38] sm:$0xff]
        %v366 = vld [vmem:[#allocation5 + $0x40] sm:$0xff]
        %v367 = vld [vmem:[#allocation5 + $0x48] sm:$0xff]
        %v368 = vld [vmem:[#allocation5 + $0x50] sm:$0xff]
        %v369 = vld [vmem:[#allocation5 + $0x58] sm:$0xff]
        %v370 = vld [vmem:[#allocation5 + $0x60] sm:$0xff]
        %v371 = vld [vmem:[#allocation5 + $0x68] sm:$0xff]
        %v372 = vld [vmem:[#allocation5 + $0x70] sm:$0xff]
        %v373 = vld [vmem:[#allocation5 + $0x78] sm:$0xff]
        %v374 = vld [vmem:[#allocation5 + $0x80] sm:$0xff]
        %v375 = vld [vmem:[#allocation5 + $0x88] sm:$0xff]
        %v376 = vld [vmem:[#allocation5 + $0x90] sm:$0xff]
        %v377 = vld [vmem:[#allocation5 + $0x98] sm:$0xff]
        %v378 = vld [vmem:[#allocation5 + $0xa0] sm:$0xff]
        %v379 = vld [vmem:[#allocation5 + $0xa8] sm:$0xff]
        %v380 = vld [vmem:[#allocation5 + $0xb0] sm:$0xff]
        %v381 = vld [vmem:[#allocation5 + $0xb8] sm:$0xff]
        %v382 = vld [vmem:[#allocation5 + $0xc0] sm:$0xff]
        %v383 = vld [vmem:[#allocation5 + $0xc8] sm:$0xff]
        %v384 = vld [vmem:[#allocation5 + $0xd0] sm:$0xff]
        %v385 = vld [vmem:[#allocation5 + $0xd8] sm:$0xff]
        %v386 = vld [vmem:[#allocation5 + $0xe0] sm:$0xff]
        %v387 = vld [vmem:[#allocation5 + $0xe8] sm:$0xff]
        %v388 = vld [vmem:[#allocation5 + $0xf0] sm:$0xff]
        %v389 = vld [vmem:[#allocation5 + $0xf8] sm:$0xff]
        %v390 = vld [vmem:[#allocation5 + $0x100] sm:$0xff]
        %v391 = vld [vmem:[#allocation5 + $0x108] sm:$0xff]
        %v392 = vld [vmem:[#allocation5 + $0x110] sm:$0xff]
        %v393 = vld [vmem:[#allocation5 + $0x118] sm:$0xff]
        %v394 = vld [vmem:[#allocation5 + $0x120] sm:$0xff]
        %v395 = vld [vmem:[#allocation5 + $0x128] sm:$0xff]
        %v396 = vld [vmem:[#allocation5 + $0x130] sm:$0xff]
        %v397 = vld [vmem:[#allocation5 + $0x138] sm:$0xff]
        %v398 = vld [vmem:[#allocation5 + $0x140] sm:$0xff]
        %v399 = vld [vmem:[#allocation5 + $0x148] sm:$0xff]
        %v400 = vld [vmem:[#allocation5 + $0x150] sm:$0xff]
        %v401 = vld [vmem:[#allocation5 + $0x158] sm:$0xff]
        %v402 = vld [vmem:[#allocation5 + $0x160] sm:$0xff]
        %v403 = vld [vmem:[#allocation5 + $0x168] sm:$0xff]
        %v404 = vld [vmem:[#allocation5 + $0x170] sm:$0xff]
        %v405 = vld [vmem:[#allocation5 + $0x178] sm:$0xff]
        %v406 = vld [vmem:[#allocation5 + $0x180] sm:$0xff]
        %v407 = vld [vmem:[#allocation5 + $0x188] sm:$0xff]
        %v408 = vld [vmem:[#allocation5 + $0x190] sm:$0xff]
        %v409 = vld [vmem:[#allocation5 + $0x198] sm:$0xff]
        %v410 = vld [vmem:[#allocation5 + $0x1a0] sm:$0xff]
        %v411 = vld [vmem:[#allocation5 + $0x1a8] sm:$0xff]
        %v412 = vld [vmem:[#allocation5 + $0x1b0] sm:$0xff]
        %v413 = vld [vmem:[#allocation5 + $0x1b8] sm:$0xff]
        %v414 = vld [vmem:[#allocation5 + $0x1c0] sm:$0xff]
        %v415 = vld [vmem:[#allocation5 + $0x1c8] sm:$0xff]
        %v416 = vld [vmem:[#allocation5 + $0x1d0] sm:$0xff]
        %v417 = vld [vmem:[#allocation5 + $0x1d8] sm:$0xff]
        %v418 = vld [vmem:[#allocation5 + $0x1e0] sm:$0xff]
        %v419 = vld [vmem:[#allocation5 + $0x1e8] sm:$0xff]
        %v420 = vld [vmem:[#allocation5 + $0x1f0] sm:$0xff]
        %v421 = vld [vmem:[#allocation5 + $0x1f8] sm:$0xff]
        %v422 = vld [vmem:[#allocation5 + $0x200] sm:$0xff]
        %v423 = vld [vmem:[#allocation5 + $0x208] sm:$0xff]
        %v424 = vld [vmem:[#allocation5 + $0x210] sm:$0xff]
        %v425 = vld [vmem:[#allocation5 + $0x218] sm:$0xff]
        %v426 = vld [vmem:[#allocation5 + $0x220] sm:$0xff]
        %v427 = vld [vmem:[#allocation5 + $0x228] sm:$0xff]
        %v428 = vld [vmem:[#allocation5 + $0x230] sm:$0xff]
        %v429 = vld [vmem:[#allocation5 + $0x238] sm:$0xff]
        %v430 = vld [vmem:[#allocation5 + $0x240] sm:$0xff]
        %v431 = vld [vmem:[#allocation5 + $0x248] sm:$0xff]
        %v432 = vld [vmem:[#allocation5 + $0x250] sm:$0xff]
        %v433 = vld [vmem:[#allocation5 + $0x258] sm:$0xff]
        %v434 = vld [vmem:[#allocation5 + $0x260] sm:$0xff]
        %v435 = vld [vmem:[#allocation5 + $0x268] sm:$0xff]
        %v436 = vld [vmem:[#allocation5 + $0x270] sm:$0xff]
        %v437 = vld [vmem:[#allocation5 + $0x278] sm:$0xff]
        %v438 = vld [vmem:[#allocation5 + $0x280] sm:$0xff]
        %v439 = vld [vmem:[#allocation5 + $0x288] sm:$0xff]
        %v440 = vld [vmem:[#allocation5 + $0x290] sm:$0xff]
        %v441 = vld [vmem:[#allocation5 + $0x298] sm:$0xff]
        %v442 = vld [vmem:[#allocation5 + $0x2a0] sm:$0xff]
        %v443 = vld [vmem:[#allocation5 + $0x2a8] sm:$0xff]
        %v444 = vld [vmem:[#allocation5 + $0x2b0] sm:$0xff]
        %v445 = vld [vmem:[#allocation5 + $0x2b8] sm:$0xff]
        %v446 = vld [vmem:[#allocation5 + $0x2c0] sm:$0xff]
        %v447 = vld [vmem:[#allocation5 + $0x2c8] sm:$0xff]
        %v448 = vld [vmem:[#allocation5 + $0x2d0] sm:$0xff]
        %v449 = vld [vmem:[#allocation5 + $0x2d8] sm:$0xff]
        %v450 = vld [vmem:[#allocation5 + $0x2e0] sm:$0xff]
        %v451 = vld [vmem:[#allocation5 + $0x2e8] sm:$0xff]
        %v452 = vld [vmem:[#allocation5 + $0x2f0] sm:$0xff]
        %v453 = vld [vmem:[#allocation5 + $0x2f8] sm:$0xff]
        %v454 = vld [vmem:[#allocation5 + $0x300] sm:$0xff]
        %v455 = vld [vmem:[#allocation5 + $0x308] sm:$0xff]
        %v456 = vld [vmem:[#allocation5 + $0x310] sm:$0xff]
        %v457 = vld [vmem:[#allocation5 + $0x318] sm:$0xff]
        %v458 = vld [vmem:[#allocation5 + $0x320] sm:$0xff]
        %v459 = vld [vmem:[#allocation5 + $0x328] sm:$0xff]
        %v460 = vld [vmem:[#allocation5 + $0x330] sm:$0xff]
        %v461 = vld [vmem:[#allocation5 + $0x338] sm:$0xff]
        %v462 = vld [vmem:[#allocation5 + $0x340] sm:$0xff]
        %v463 = vld [vmem:[#allocation5 + $0x348] sm:$0xff]
        %v464 = vld [vmem:[#allocation5 + $0x350] sm:$0xff]
        %v465 = vld [vmem:[#allocation5 + $0x358] sm:$0xff]
        %v466 = vld [vmem:[#allocation5 + $0x360] sm:$0xff]
        %v467 = vld [vmem:[#allocation5 + $0x368] sm:$0xff]
        %v468 = vld [vmem:[#allocation5 + $0x370] sm:$0xff]
        %v469 = vld [vmem:[#allocation5 + $0x378] sm:$0xff]
        %v470 = vld [vmem:[#allocation5 + $0x380] sm:$0xff]
        %v471 = vld [vmem:[#allocation5 + $0x388] sm:$0xff]
        %v472 = vld [vmem:[#allocation5 + $0x390] sm:$0xff]
        %v473 = vld [vmem:[#allocation5 + $0x398] sm:$0xff]
        %v474 = vld [vmem:[#allocation5 + $0x3a0] sm:$0xff]
        %v475 = vld [vmem:[#allocation5 + $0x3a8] sm:$0xff]
        %v476 = vld [vmem:[#allocation5 + $0x3b0] sm:$0xff]
        %v477 = vld [vmem:[#allocation5 + $0x3b8] sm:$0xff]
        %v478 = vld [vmem:[#allocation5 + $0x3c0] sm:$0xff]
        %v479 = vld [vmem:[#allocation5 + $0x3c8] sm:$0xff]
        %v480 = vld [vmem:[#allocation5 + $0x3d0] sm:$0xff]
        %v481 = vld [vmem:[#allocation5 + $0x3d8] sm:$0xff]
        %v482 = vld [vmem:[#allocation5 + $0x3e0] sm:$0xff]
        %v483 = vld [vmem:[#allocation5 + $0x3e8] sm:$0xff]
        %v484 = vld [vmem:[#allocation5 + $0x3f0] sm:$0xff]
        %v485 = vld [vmem:[#allocation5 + $0x3f8] sm:$0xff]
        %v486 = vld [vmem:[#allocation5 + $0x400] sm:$0xff]
        %v487 = vld [vmem:[#allocation5 + $0x408] sm:$0xff]
        %v488 = vld [vmem:[#allocation5 + $0x410] sm:$0xff]
        %v489 = vld [vmem:[#allocation5 + $0x418] sm:$0xff]
        %v490 = vld [vmem:[#allocation5 + $0x420] sm:$0xff]
        %v491 = vld [vmem:[#allocation5 + $0x428] sm:$0xff]
        %v492 = vld [vmem:[#allocation5 + $0x430] sm:$0xff]
        %v493 = vld [vmem:[#allocation5 + $0x438] sm:$0xff]
        %v494 = vld [vmem:[#allocation5 + $0x440] sm:$0xff]
        %v495 = vld [vmem:[#allocation5 + $0x448] sm:$0xff]
        %v496 = vld [vmem:[#allocation5 + $0x450] sm:$0xff]
        %v497 = vld [vmem:[#allocation5 + $0x458] sm:$0xff]
        %v498 = vld [vmem:[#allocation5 + $0x460] sm:$0xff]
        %v499 = vld [vmem:[#allocation5 + $0x468] sm:$0xff]
        %v500 = vld [vmem:[#allocation5 + $0x470] sm:$0xff]
        %v501 = vld [vmem:[#allocation5 + $0x478] sm:$0xff]
        %v502 = vld [vmem:[#allocation5 + $0x480] sm:$0xff]
        %v503 = vld [vmem:[#allocation5 + $0x488] sm:$0xff]
        %v504 = vld [vmem:[#allocation5 + $0x490] sm:$0xff]
        %v505 = vld [vmem:[#allocation5 + $0x498] sm:$0xff]
        %v506 = vld [vmem:[#allocation5 + $0x4a0] sm:$0xff]
        %v507 = vld [vmem:[#allocation5 + $0x4a8] sm:$0xff]
        %v508 = vld [vmem:[#allocation5 + $0x4b0] sm:$0xff]
        %v509 = vld [vmem:[#allocation5 + $0x4b8] sm:$0xff]
        %v510 = vld [vmem:[#allocation5 + $0x4c0] sm:$0xff]
        %v511 = vld [vmem:[#allocation5 + $0x4c8] sm:$0xff]
        %v512 = vld [vmem:[#allocation5 + $0x4d0] sm:$0xff]
        %v513 = vld [vmem:[#allocation5 + $0x4d8] sm:$0xff]
        %v514 = vld [vmem:[#allocation5 + $0x4e0] sm:$0xff]
        %v515 = vld [vmem:[#allocation5 + $0x4e8] sm:$0xff]
        %v516 = vld [vmem:[#allocation5 + $0x4f0] sm:$0xff]
        %v517 = vld [vmem:[#allocation5 + $0x4f8] sm:$0xff]
        %v518 = vld [vmem:[#allocation5 + $0x500] sm:$0xff]
        %v519 = vld [vmem:[#allocation5 + $0x508] sm:$0xff]
        %v520 = vld [vmem:[#allocation5 + $0x510] sm:$0xff]
        %v521 = vld [vmem:[#allocation5 + $0x518] sm:$0xff]
        %v522 = vld [vmem:[#allocation5 + $0x520] sm:$0xff]
        %v523 = vld [vmem:[#allocation5 + $0x528] sm:$0xff]
        %v524 = vld [vmem:[#allocation5 + $0x530] sm:$0xff]
        %v525 = vld [vmem:[#allocation5 + $0x538] sm:$0xff]
        %v526 = vld [vmem:[#allocation5 + $0x540] sm:$0xff]
        %v527 = vld [vmem:[#allocation5 + $0x548] sm:$0xff]
        %v528 = vld [vmem:[#allocation5 + $0x550] sm:$0xff]
        %v529 = vld [vmem:[#allocation5 + $0x558] sm:$0xff]
        %v530 = vld [vmem:[#allocation5 + $0x560] sm:$0xff]
        %v531 = vld [vmem:[#allocation5 + $0x568] sm:$0xff]
        %v532 = vld [vmem:[#allocation5 + $0x570] sm:$0xff]
        %v533 = vld [vmem:[#allocation5 + $0x578] sm:$0xff]
        %v534 = vld [vmem:[#allocation5 + $0x580] sm:$0xff]
        %v535 = vld [vmem:[#allocation5 + $0x588] sm:$0xff]
        %v536 = vld [vmem:[#allocation5 + $0x590] sm:$0xff]
        %v537 = vld [vmem:[#allocation5 + $0x598] sm:$0xff]
        %v538 = vld [vmem:[#allocation5 + $0x5a0] sm:$0xff]
        %v539 = vld [vmem:[#allocation5 + $0x5a8] sm:$0xff]
        %v540 = vld [vmem:[#allocation5 + $0x5b0] sm:$0xff]
        %v541 = vld [vmem:[#allocation5 + $0x5b8] sm:$0xff]
        %v542 = vld [vmem:[#allocation5 + $0x5c0] sm:$0xff]
        %v543 = vld [vmem:[#allocation5 + $0x5c8] sm:$0xff]
        %v544 = vld [vmem:[#allocation5 + $0x5d0] sm:$0xff]
        %v545 = vld [vmem:[#allocation5 + $0x5d8] sm:$0xff]
        %v546 = vld [vmem:[#allocation5 + $0x5e0] sm:$0xff]
        %v547 = vld [vmem:[#allocation5 + $0x5e8] sm:$0xff]
        %v548 = vld [vmem:[#allocation5 + $0x5f0] sm:$0xff]
        %v549 = vld [vmem:[#allocation5 + $0x5f8] sm:$0xff]
        %v550 = vld [vmem:[#allocation5 + $0x600] sm:$0xff]
        %v551 = vld [vmem:[#allocation5 + $0x608] sm:$0xff]
        %v552 = vld [vmem:[#allocation5 + $0x610] sm:$0xff]
        %v553 = vld [vmem:[#allocation5 + $0x618] sm:$0xff]
        %v554 = vld [vmem:[#allocation5 + $0x620] sm:$0xff]
        %v555 = vld [vmem:[#allocation5 + $0x628] sm:$0xff]
        %v556 = vld [vmem:[#allocation5 + $0x630] sm:$0xff]
        %v557 = vld [vmem:[#allocation5 + $0x638] sm:$0xff]
        %v558 = vld [vmem:[#allocation5 + $0x640] sm:$0xff]
        %v559 = vld [vmem:[#allocation5 + $0x648] sm:$0xff]
        %v560 = vld [vmem:[#allocation5 + $0x650] sm:$0xff]
        %v561 = vld [vmem:[#allocation5 + $0x658] sm:$0xff]
        %v562 = vld [vmem:[#allocation5 + $0x660] sm:$0xff]
        %v563 = vld [vmem:[#allocation5 + $0x668] sm:$0xff]
        %v564 = vld [vmem:[#allocation5 + $0x670] sm:$0xff]
        %v565 = vld [vmem:[#allocation5 + $0x678] sm:$0xff]
        %v566 = vld [vmem:[#allocation5 + $0x680] sm:$0xff]
        %v567 = vld [vmem:[#allocation5 + $0x688] sm:$0xff]
        %v568 = vld [vmem:[#allocation5 + $0x690] sm:$0xff]
        %v569 = vld [vmem:[#allocation5 + $0x698] sm:$0xff]
        %v570 = vld [vmem:[#allocation5 + $0x6a0] sm:$0xff]
        %v571 = vld [vmem:[#allocation5 + $0x6a8] sm:$0xff]
        %v572 = vld [vmem:[#allocation5 + $0x6b0] sm:$0xff]
        %v573 = vld [vmem:[#allocation5 + $0x6b8] sm:$0xff]
        %v574 = vld [vmem:[#allocation5 + $0x6c0] sm:$0xff]
        %v575 = vld [vmem:[#allocation5 + $0x6c8] sm:$0xff]
        %v576 = vld [vmem:[#allocation5 + $0x6d0] sm:$0xff]
        %v577 = vld [vmem:[#allocation5 + $0x6d8] sm:$0xff]
        %v578 = vld [vmem:[#allocation5 + $0x6e0] sm:$0xff]
        %v579 = vld [vmem:[#allocation5 + $0x6e8] sm:$0xff]
        %v580 = vld [vmem:[#allocation5 + $0x6f0] sm:$0xff]
        %v581 = vld [vmem:[#allocation5 + $0x6f8] sm:$0xff]
        %v582 = vld [vmem:[#allocation5 + $0x700] sm:$0xff]
        %v583 = vld [vmem:[#allocation5 + $0x708] sm:$0xff]
        %v584 = vld [vmem:[#allocation5 + $0x710] sm:$0xff]
        %v585 = vld [vmem:[#allocation5 + $0x718] sm:$0xff]
        %v586 = vld [vmem:[#allocation5 + $0x720] sm:$0xff]
        %v587 = vld [vmem:[#allocation5 + $0x728] sm:$0xff]
        %v588 = vld [vmem:[#allocation5 + $0x730] sm:$0xff]
        %v589 = vld [vmem:[#allocation5 + $0x738] sm:$0xff]
        %v590 = vld [vmem:[#allocation5 + $0x740] sm:$0xff]
        %v591 = vld [vmem:[#allocation5 + $0x748] sm:$0xff]
        %v592 = vld [vmem:[#allocation5 + $0x750] sm:$0xff]
        %v593 = vld [vmem:[#allocation5 + $0x758] sm:$0xff]
        %v594 = vld [vmem:[#allocation5 + $0x760] sm:$0xff]
        %v595 = vld [vmem:[#allocation5 + $0x768] sm:$0xff]
        %v596 = vld [vmem:[#allocation5 + $0x770] sm:$0xff]
        %v597 = vld [vmem:[#allocation5 + $0x778] sm:$0xff]
        %v598 = vld [vmem:[#allocation5 + $0x780] sm:$0xff]
        %v599 = vld [vmem:[#allocation5 + $0x788] sm:$0xff]
        %v600 = vld [vmem:[#allocation5 + $0x790] sm:$0xff]
        %v601 = vld [vmem:[#allocation5 + $0x798] sm:$0xff]
        %v602 = vld [vmem:[#allocation5 + $0x7a0] sm:$0xff]
        %v603 = vld [vmem:[#allocation5 + $0x7a8] sm:$0xff]
        %v604 = vld [vmem:[#allocation5 + $0x7b0] sm:$0xff]
        %v605 = vld [vmem:[#allocation5 + $0x7b8] sm:$0xff]
        %v606 = vld [vmem:[#allocation5 + $0x7c0] sm:$0xff]
        %v607 = vld [vmem:[#allocation5 + $0x7c8] sm:$0xff]
        %v608 = vld [vmem:[#allocation5 + $0x7d0] sm:$0xff]
        %v609 = vld [vmem:[#allocation5 + $0x7d8] sm:$0xff]
        %v610 = vld [vmem:[#allocation5 + $0x7e0] sm:$0xff]
        %v611 = vld [vmem:[#allocation5 + $0x7e8] sm:$0xff]
        %v612 = vld [vmem:[#allocation5 + $0x7f0] sm:$0xff]
        %v613 = vld [vmem:[#allocation5 + $0x7f8] sm:$0xff]
        %v614 = vld [vmem:[#allocation7] sm:$0xff]
        %v616 = vperm.slane %v614, 0
        %v617 = vperm.slane %v614, 1
        %v618 = vperm.slane %v614, 2
        %v619 = vperm.slane %v614, 3
        %v620 = vperm.slane %v614, 4
        %v621 = vperm.slane %v614, 5
        %v622 = vperm.slane %v614, 6
        %v623 = vperm.slane %v614, 7
        %v888 = vunpack.c.l.b16 %v358
        %v889 = vunpack.c.h.b16 %v358
        %v890 = vunpack.c.l.b16 %v359
        %v891 = vunpack.c.h.b16 %v359
        %v892 = vunpack.c.l.b16 %v360
        %v893 = vunpack.c.h.b16 %v360
        %v894 = vunpack.c.l.b16 %v361
        %v895 = vunpack.c.h.b16 %v361
        %v896 = vunpack.c.l.b16 %v362
        %v897 = vunpack.c.h.b16 %v362
        %v898 = vunpack.c.l.b16 %v363
        %v899 = vunpack.c.h.b16 %v363
        %v900 = vunpack.c.l.b16 %v364
        %v901 = vunpack.c.h.b16 %v364
        %v902 = vunpack.c.l.b16 %v365
        %v903 = vunpack.c.h.b16 %v365
        %v904 = vunpack.c.l.b16 %v366
        %v905 = vunpack.c.h.b16 %v366
        %v906 = vunpack.c.l.b16 %v367
        %v907 = vunpack.c.h.b16 %v367
        %v908 = vunpack.c.l.b16 %v368
        %v909 = vunpack.c.h.b16 %v368
        %v910 = vunpack.c.l.b16 %v369
        %v911 = vunpack.c.h.b16 %v369
        %v912 = vunpack.c.l.b16 %v370
        %v913 = vunpack.c.h.b16 %v370
        %v914 = vunpack.c.l.b16 %v371
        %v915 = vunpack.c.h.b16 %v371
        %v916 = vunpack.c.l.b16 %v372
        %v917 = vunpack.c.h.b16 %v372
        %v918 = vunpack.c.l.b16 %v373
        %v919 = vunpack.c.h.b16 %v373
        %v920 = vunpack.c.l.b16 %v374
        %v921 = vunpack.c.h.b16 %v374
        %v922 = vunpack.c.l.b16 %v375
        %v923 = vunpack.c.h.b16 %v375
        %v924 = vunpack.c.l.b16 %v376
        %v925 = vunpack.c.h.b16 %v376
        %v926 = vunpack.c.l.b16 %v377
        %v927 = vunpack.c.h.b16 %v377
        %v928 = vunpack.c.l.b16 %v378
        %v929 = vunpack.c.h.b16 %v378
        %v930 = vunpack.c.l.b16 %v379
        %v931 = vunpack.c.h.b16 %v379
        %v932 = vunpack.c.l.b16 %v380
        %v933 = vunpack.c.h.b16 %v380
        %v934 = vunpack.c.l.b16 %v381
        %v935 = vunpack.c.h.b16 %v381
        %v936 = vunpack.c.l.b16 %v382
        %v937 = vunpack.c.h.b16 %v382
        %v938 = vunpack.c.l.b16 %v383
        %v939 = vunpack.c.h.b16 %v383
        %v940 = vunpack.c.l.b16 %v384
        %v941 = vunpack.c.h.b16 %v384
        %v942 = vunpack.c.l.b16 %v385
        %v943 = vunpack.c.h.b16 %v385
        %v944 = vunpack.c.l.b16 %v386
        %v945 = vunpack.c.h.b16 %v386
        %v946 = vunpack.c.l.b16 %v387
        %v947 = vunpack.c.h.b16 %v387
        %v948 = vunpack.c.l.b16 %v388
        %v949 = vunpack.c.h.b16 %v388
        %v950 = vunpack.c.l.b16 %v389
        %v951 = vunpack.c.h.b16 %v389
        %v952 = vunpack.c.l.b16 %v390
        %v953 = vunpack.c.h.b16 %v390
        %v954 = vunpack.c.l.b16 %v391
        %v955 = vunpack.c.h.b16 %v391
        %v956 = vunpack.c.l.b16 %v392
        %v957 = vunpack.c.h.b16 %v392
        %v958 = vunpack.c.l.b16 %v393
        %v959 = vunpack.c.h.b16 %v393
        %v960 = vunpack.c.l.b16 %v394
        %v961 = vunpack.c.h.b16 %v394
        %v962 = vunpack.c.l.b16 %v395
        %v963 = vunpack.c.h.b16 %v395
        %v964 = vunpack.c.l.b16 %v396
        %v965 = vunpack.c.h.b16 %v396
        %v966 = vunpack.c.l.b16 %v397
        %v967 = vunpack.c.h.b16 %v397
        %v968 = vunpack.c.l.b16 %v398
        %v969 = vunpack.c.h.b16 %v398
        %v970 = vunpack.c.l.b16 %v399
        %v971 = vunpack.c.h.b16 %v399
        %v972 = vunpack.c.l.b16 %v400
        %v973 = vunpack.c.h.b16 %v400
        %v974 = vunpack.c.l.b16 %v401
        %v975 = vunpack.c.h.b16 %v401
        %v976 = vunpack.c.l.b16 %v402
        %v977 = vunpack.c.h.b16 %v402
        %v978 = vunpack.c.l.b16 %v403
        %v979 = vunpack.c.h.b16 %v403
        %v980 = vunpack.c.l.b16 %v404
        %v981 = vunpack.c.h.b16 %v404
        %v982 = vunpack.c.l.b16 %v405
        %v983 = vunpack.c.h.b16 %v405
        %v984 = vunpack.c.l.b16 %v406
        %v985 = vunpack.c.h.b16 %v406
        %v986 = vunpack.c.l.b16 %v407
        %v987 = vunpack.c.h.b16 %v407
        %v988 = vunpack.c.l.b16 %v408
        %v989 = vunpack.c.h.b16 %v408
        %v990 = vunpack.c.l.b16 %v409
        %v991 = vunpack.c.h.b16 %v409
        %v992 = vunpack.c.l.b16 %v410
        %v993 = vunpack.c.h.b16 %v410
        %v994 = vunpack.c.l.b16 %v411
        %v995 = vunpack.c.h.b16 %v411
        %v996 = vunpack.c.l.b16 %v412
        %v997 = vunpack.c.h.b16 %v412
        %v998 = vunpack.c.l.b16 %v413
        %v999 = vunpack.c.h.b16 %v413
        %v1000 = vunpack.c.l.b16 %v414
        %v1001 = vunpack.c.h.b16 %v414
        %v1002 = vunpack.c.l.b16 %v415
        %v1003 = vunpack.c.h.b16 %v415
        %v1004 = vunpack.c.l.b16 %v416
        %v1005 = vunpack.c.h.b16 %v416
        %v1006 = vunpack.c.l.b16 %v417
        %v1007 = vunpack.c.h.b16 %v417
        %v1008 = vunpack.c.l.b16 %v418
        %v1009 = vunpack.c.h.b16 %v418
        %v1010 = vunpack.c.l.b16 %v419
        %v1011 = vunpack.c.h.b16 %v419
        %v1012 = vunpack.c.l.b16 %v420
        %v1013 = vunpack.c.h.b16 %v420
        %v1014 = vunpack.c.l.b16 %v421
        %v1015 = vunpack.c.h.b16 %v421
        %v1016 = vunpack.c.l.b16 %v422
        %v1017 = vunpack.c.h.b16 %v422
        %v1018 = vunpack.c.l.b16 %v423
        %v1019 = vunpack.c.h.b16 %v423
        %v1020 = vunpack.c.l.b16 %v424
        %v1021 = vunpack.c.h.b16 %v424
        %v1022 = vunpack.c.l.b16 %v425
        %v1023 = vunpack.c.h.b16 %v425
        %v1024 = vunpack.c.l.b16 %v426
        %v1025 = vunpack.c.h.b16 %v426
        %v1026 = vunpack.c.l.b16 %v427
        %v1027 = vunpack.c.h.b16 %v427
        %v1028 = vunpack.c.l.b16 %v428
        %v1029 = vunpack.c.h.b16 %v428
        %v1030 = vunpack.c.l.b16 %v429
        %v1031 = vunpack.c.h.b16 %v429
        %v1032 = vunpack.c.l.b16 %v430
        %v1033 = vunpack.c.h.b16 %v430
        %v1034 = vunpack.c.l.b16 %v431
        %v1035 = vunpack.c.h.b16 %v431
        %v1036 = vunpack.c.l.b16 %v432
        %v1037 = vunpack.c.h.b16 %v432
        %v1038 = vunpack.c.l.b16 %v433
        %v1039 = vunpack.c.h.b16 %v433
        %v1040 = vunpack.c.l.b16 %v434
        %v1041 = vunpack.c.h.b16 %v434
        %v1042 = vunpack.c.l.b16 %v435
        %v1043 = vunpack.c.h.b16 %v435
        %v1044 = vunpack.c.l.b16 %v436
        %v1045 = vunpack.c.h.b16 %v436
        %v1046 = vunpack.c.l.b16 %v437
        %v1047 = vunpack.c.h.b16 %v437
        %v1048 = vunpack.c.l.b16 %v438
        %v1049 = vunpack.c.h.b16 %v438
        %v1050 = vunpack.c.l.b16 %v439
        %v1051 = vunpack.c.h.b16 %v439
        %v1052 = vunpack.c.l.b16 %v440
        %v1053 = vunpack.c.h.b16 %v440
        %v1054 = vunpack.c.l.b16 %v441
        %v1055 = vunpack.c.h.b16 %v441
        %v1056 = vunpack.c.l.b16 %v442
        %v1057 = vunpack.c.h.b16 %v442
        %v1058 = vunpack.c.l.b16 %v443
        %v1059 = vunpack.c.h.b16 %v443
        %v1060 = vunpack.c.l.b16 %v444
        %v1061 = vunpack.c.h.b16 %v444
        %v1062 = vunpack.c.l.b16 %v445
        %v1063 = vunpack.c.h.b16 %v445
        %v1064 = vunpack.c.l.b16 %v446
        %v1065 = vunpack.c.h.b16 %v446
        %v1066 = vunpack.c.l.b16 %v447
        %v1067 = vunpack.c.h.b16 %v447
        %v1068 = vunpack.c.l.b16 %v448
        %v1069 = vunpack.c.h.b16 %v448
        %v1070 = vunpack.c.l.b16 %v449
        %v1071 = vunpack.c.h.b16 %v449
        %v1072 = vunpack.c.l.b16 %v450
        %v1073 = vunpack.c.h.b16 %v450
        %v1074 = vunpack.c.l.b16 %v451
        %v1075 = vunpack.c.h.b16 %v451
        %v1076 = vunpack.c.l.b16 %v452
        %v1077 = vunpack.c.h.b16 %v452
        %v1078 = vunpack.c.l.b16 %v453
        %v1079 = vunpack.c.h.b16 %v453
        %v1080 = vunpack.c.l.b16 %v454
        %v1081 = vunpack.c.h.b16 %v454
        %v1082 = vunpack.c.l.b16 %v455
        %v1083 = vunpack.c.h.b16 %v455
        %v1084 = vunpack.c.l.b16 %v456
        %v1085 = vunpack.c.h.b16 %v456
        %v1086 = vunpack.c.l.b16 %v457
        %v1087 = vunpack.c.h.b16 %v457
        %v1088 = vunpack.c.l.b16 %v458
        %v1089 = vunpack.c.h.b16 %v458
        %v1090 = vunpack.c.l.b16 %v459
        %v1091 = vunpack.c.h.b16 %v459
        %v1092 = vunpack.c.l.b16 %v460
        %v1093 = vunpack.c.h.b16 %v460
        %v1094 = vunpack.c.l.b16 %v461
        %v1095 = vunpack.c.h.b16 %v461
        %v1096 = vunpack.c.l.b16 %v462
        %v1097 = vunpack.c.h.b16 %v462
        %v1098 = vunpack.c.l.b16 %v463
        %v1099 = vunpack.c.h.b16 %v463
        %v1100 = vunpack.c.l.b16 %v464
        %v1101 = vunpack.c.h.b16 %v464
        %v1102 = vunpack.c.l.b16 %v465
        %v1103 = vunpack.c.h.b16 %v465
        %v1104 = vunpack.c.l.b16 %v466
        %v1105 = vunpack.c.h.b16 %v466
        %v1106 = vunpack.c.l.b16 %v467
        %v1107 = vunpack.c.h.b16 %v467
        %v1108 = vunpack.c.l.b16 %v468
        %v1109 = vunpack.c.h.b16 %v468
        %v1110 = vunpack.c.l.b16 %v469
        %v1111 = vunpack.c.h.b16 %v469
        %v1112 = vunpack.c.l.b16 %v470
        %v1113 = vunpack.c.h.b16 %v470
        %v1114 = vunpack.c.l.b16 %v471
        %v1115 = vunpack.c.h.b16 %v471
        %v1116 = vunpack.c.l.b16 %v472
        %v1117 = vunpack.c.h.b16 %v472
        %v1118 = vunpack.c.l.b16 %v473
        %v1119 = vunpack.c.h.b16 %v473
        %v1120 = vunpack.c.l.b16 %v474
        %v1121 = vunpack.c.h.b16 %v474
        %v1122 = vunpack.c.l.b16 %v475
        %v1123 = vunpack.c.h.b16 %v475
        %v1124 = vunpack.c.l.b16 %v476
        %v1125 = vunpack.c.h.b16 %v476
        %v1126 = vunpack.c.l.b16 %v477
        %v1127 = vunpack.c.h.b16 %v477
        %v1128 = vunpack.c.l.b16 %v478
        %v1129 = vunpack.c.h.b16 %v478
        %v1130 = vunpack.c.l.b16 %v479
        %v1131 = vunpack.c.h.b16 %v479
        %v1132 = vunpack.c.l.b16 %v480
        %v1133 = vunpack.c.h.b16 %v480
        %v1134 = vunpack.c.l.b16 %v481
        %v1135 = vunpack.c.h.b16 %v481
        %v1136 = vunpack.c.l.b16 %v482
        %v1137 = vunpack.c.h.b16 %v482
        %v1138 = vunpack.c.l.b16 %v483
        %v1139 = vunpack.c.h.b16 %v483
        %v1140 = vunpack.c.l.b16 %v484
        %v1141 = vunpack.c.h.b16 %v484
        %v1142 = vunpack.c.l.b16 %v485
        %v1143 = vunpack.c.h.b16 %v485
        %v1144 = vunpack.c.l.b16 %v486
        %v1145 = vunpack.c.h.b16 %v486
        %v1146 = vunpack.c.l.b16 %v487
        %v1147 = vunpack.c.h.b16 %v487
        %v1148 = vunpack.c.l.b16 %v488
        %v1149 = vunpack.c.h.b16 %v488
        %v1150 = vunpack.c.l.b16 %v489
        %v1151 = vunpack.c.h.b16 %v489
        %v1152 = vunpack.c.l.b16 %v490
        %v1153 = vunpack.c.h.b16 %v490
        %v1154 = vunpack.c.l.b16 %v491
        %v1155 = vunpack.c.h.b16 %v491
        %v1156 = vunpack.c.l.b16 %v492
        %v1157 = vunpack.c.h.b16 %v492
        %v1158 = vunpack.c.l.b16 %v493
        %v1159 = vunpack.c.h.b16 %v493
        %v1160 = vunpack.c.l.b16 %v494
        %v1161 = vunpack.c.h.b16 %v494
        %v1162 = vunpack.c.l.b16 %v495
        %v1163 = vunpack.c.h.b16 %v495
        %v1164 = vunpack.c.l.b16 %v496
        %v1165 = vunpack.c.h.b16 %v496
        %v1166 = vunpack.c.l.b16 %v497
        %v1167 = vunpack.c.h.b16 %v497
        %v1168 = vunpack.c.l.b16 %v498
        %v1169 = vunpack.c.h.b16 %v498
        %v1170 = vunpack.c.l.b16 %v499
        %v1171 = vunpack.c.h.b16 %v499
        %v1172 = vunpack.c.l.b16 %v500
        %v1173 = vunpack.c.h.b16 %v500
        %v1174 = vunpack.c.l.b16 %v501
        %v1175 = vunpack.c.h.b16 %v501
        %v1176 = vunpack.c.l.b16 %v502
        %v1177 = vunpack.c.h.b16 %v502
        %v1178 = vunpack.c.l.b16 %v503
        %v1179 = vunpack.c.h.b16 %v503
        %v1180 = vunpack.c.l.b16 %v504
        %v1181 = vunpack.c.h.b16 %v504
        %v1182 = vunpack.c.l.b16 %v505
        %v1183 = vunpack.c.h.b16 %v505
        %v1184 = vunpack.c.l.b16 %v506
        %v1185 = vunpack.c.h.b16 %v506
        %v1186 = vunpack.c.l.b16 %v507
        %v1187 = vunpack.c.h.b16 %v507
        %v1188 = vunpack.c.l.b16 %v508
        %v1189 = vunpack.c.h.b16 %v508
        %v1190 = vunpack.c.l.b16 %v509
        %v1191 = vunpack.c.h.b16 %v509
        %v1192 = vunpack.c.l.b16 %v510
        %v1193 = vunpack.c.h.b16 %v510
        %v1194 = vunpack.c.l.b16 %v511
        %v1195 = vunpack.c.h.b16 %v511
        %v1196 = vunpack.c.l.b16 %v512
        %v1197 = vunpack.c.h.b16 %v512
        %v1198 = vunpack.c.l.b16 %v513
        %v1199 = vunpack.c.h.b16 %v513
        %v1200 = vunpack.c.l.b16 %v514
        %v1201 = vunpack.c.h.b16 %v514
        %v1202 = vunpack.c.l.b16 %v515
        %v1203 = vunpack.c.h.b16 %v515
        %v1204 = vunpack.c.l.b16 %v516
        %v1205 = vunpack.c.h.b16 %v516
        %v1206 = vunpack.c.l.b16 %v517
        %v1207 = vunpack.c.h.b16 %v517
        %v1208 = vunpack.c.l.b16 %v518
        %v1209 = vunpack.c.h.b16 %v518
        %v1210 = vunpack.c.l.b16 %v519
        %v1211 = vunpack.c.h.b16 %v519
        %v1212 = vunpack.c.l.b16 %v520
        %v1213 = vunpack.c.h.b16 %v520
        %v1214 = vunpack.c.l.b16 %v521
        %v1215 = vunpack.c.h.b16 %v521
        %v1216 = vunpack.c.l.b16 %v522
        %v1217 = vunpack.c.h.b16 %v522
        %v1218 = vunpack.c.l.b16 %v523
        %v1219 = vunpack.c.h.b16 %v523
        %v1220 = vunpack.c.l.b16 %v524
        %v1221 = vunpack.c.h.b16 %v524
        %v1222 = vunpack.c.l.b16 %v525
        %v1223 = vunpack.c.h.b16 %v525
        %v1224 = vunpack.c.l.b16 %v526
        %v1225 = vunpack.c.h.b16 %v526
        %v1226 = vunpack.c.l.b16 %v527
        %v1227 = vunpack.c.h.b16 %v527
        %v1228 = vunpack.c.l.b16 %v528
        %v1229 = vunpack.c.h.b16 %v528
        %v1230 = vunpack.c.l.b16 %v529
        %v1231 = vunpack.c.h.b16 %v529
        %v1232 = vunpack.c.l.b16 %v530
        %v1233 = vunpack.c.h.b16 %v530
        %v1234 = vunpack.c.l.b16 %v531
        %v1235 = vunpack.c.h.b16 %v531
        %v1236 = vunpack.c.l.b16 %v532
        %v1237 = vunpack.c.h.b16 %v532
        %v1238 = vunpack.c.l.b16 %v533
        %v1239 = vunpack.c.h.b16 %v533
        %v1240 = vunpack.c.l.b16 %v534
        %v1241 = vunpack.c.h.b16 %v534
        %v1242 = vunpack.c.l.b16 %v535
        %v1243 = vunpack.c.h.b16 %v535
        %v1244 = vunpack.c.l.b16 %v536
        %v1245 = vunpack.c.h.b16 %v536
        %v1246 = vunpack.c.l.b16 %v537
        %v1247 = vunpack.c.h.b16 %v537
        %v1248 = vunpack.c.l.b16 %v538
        %v1249 = vunpack.c.h.b16 %v538
        %v1250 = vunpack.c.l.b16 %v539
        %v1251 = vunpack.c.h.b16 %v539
        %v1252 = vunpack.c.l.b16 %v540
        %v1253 = vunpack.c.h.b16 %v540
        %v1254 = vunpack.c.l.b16 %v541
        %v1255 = vunpack.c.h.b16 %v541
        %v1256 = vunpack.c.l.b16 %v542
        %v1257 = vunpack.c.h.b16 %v542
        %v1258 = vunpack.c.l.b16 %v543
        %v1259 = vunpack.c.h.b16 %v543
        %v1260 = vunpack.c.l.b16 %v544
        %v1261 = vunpack.c.h.b16 %v544
        %v1262 = vunpack.c.l.b16 %v545
        %v1263 = vunpack.c.h.b16 %v545
        %v1264 = vunpack.c.l.b16 %v546
        %v1265 = vunpack.c.h.b16 %v546
        %v1266 = vunpack.c.l.b16 %v547
        %v1267 = vunpack.c.h.b16 %v547
        %v1268 = vunpack.c.l.b16 %v548
        %v1269 = vunpack.c.h.b16 %v548
        %v1270 = vunpack.c.l.b16 %v549
        %v1271 = vunpack.c.h.b16 %v549
        %v1272 = vunpack.c.l.b16 %v550
        %v1273 = vunpack.c.h.b16 %v550
        %v1274 = vunpack.c.l.b16 %v551
        %v1275 = vunpack.c.h.b16 %v551
        %v1276 = vunpack.c.l.b16 %v552
        %v1277 = vunpack.c.h.b16 %v552
        %v1278 = vunpack.c.l.b16 %v553
        %v1279 = vunpack.c.h.b16 %v553
        %v1280 = vunpack.c.l.b16 %v554
        %v1281 = vunpack.c.h.b16 %v554
        %v1282 = vunpack.c.l.b16 %v555
        %v1283 = vunpack.c.h.b16 %v555
        %v1284 = vunpack.c.l.b16 %v556
        %v1285 = vunpack.c.h.b16 %v556
        %v1286 = vunpack.c.l.b16 %v557
        %v1287 = vunpack.c.h.b16 %v557
        %v1288 = vunpack.c.l.b16 %v558
        %v1289 = vunpack.c.h.b16 %v558
        %v1290 = vunpack.c.l.b16 %v559
        %v1291 = vunpack.c.h.b16 %v559
        %v1292 = vunpack.c.l.b16 %v560
        %v1293 = vunpack.c.h.b16 %v560
        %v1294 = vunpack.c.l.b16 %v561
        %v1295 = vunpack.c.h.b16 %v561
        %v1296 = vunpack.c.l.b16 %v562
        %v1297 = vunpack.c.h.b16 %v562
        %v1298 = vunpack.c.l.b16 %v563
        %v1299 = vunpack.c.h.b16 %v563
        %v1300 = vunpack.c.l.b16 %v564
        %v1301 = vunpack.c.h.b16 %v564
        %v1302 = vunpack.c.l.b16 %v565
        %v1303 = vunpack.c.h.b16 %v565
        %v1304 = vunpack.c.l.b16 %v566
        %v1305 = vunpack.c.h.b16 %v566
        %v1306 = vunpack.c.l.b16 %v567
        %v1307 = vunpack.c.h.b16 %v567
        %v1308 = vunpack.c.l.b16 %v568
        %v1309 = vunpack.c.h.b16 %v568
        %v1310 = vunpack.c.l.b16 %v569
        %v1311 = vunpack.c.h.b16 %v569
        %v1312 = vunpack.c.l.b16 %v570
        %v1313 = vunpack.c.h.b16 %v570
        %v1314 = vunpack.c.l.b16 %v571
        %v1315 = vunpack.c.h.b16 %v571
        %v1316 = vunpack.c.l.b16 %v572
        %v1317 = vunpack.c.h.b16 %v572
        %v1318 = vunpack.c.l.b16 %v573
        %v1319 = vunpack.c.h.b16 %v573
        %v1320 = vunpack.c.l.b16 %v574
        %v1321 = vunpack.c.h.b16 %v574
        %v1322 = vunpack.c.l.b16 %v575
        %v1323 = vunpack.c.h.b16 %v575
        %v1324 = vunpack.c.l.b16 %v576
        %v1325 = vunpack.c.h.b16 %v576
        %v1326 = vunpack.c.l.b16 %v577
        %v1327 = vunpack.c.h.b16 %v577
        %v1328 = vunpack.c.l.b16 %v578
        %v1329 = vunpack.c.h.b16 %v578
        %v1330 = vunpack.c.l.b16 %v579
        %v1331 = vunpack.c.h.b16 %v579
        %v1332 = vunpack.c.l.b16 %v580
        %v1333 = vunpack.c.h.b16 %v580
        %v1334 = vunpack.c.l.b16 %v581
        %v1335 = vunpack.c.h.b16 %v581
        %v1336 = vunpack.c.l.b16 %v582
        %v1337 = vunpack.c.h.b16 %v582
        %v1338 = vunpack.c.l.b16 %v583
        %v1339 = vunpack.c.h.b16 %v583
        %v1340 = vunpack.c.l.b16 %v584
        %v1341 = vunpack.c.h.b16 %v584
        %v1342 = vunpack.c.l.b16 %v585
        %v1343 = vunpack.c.h.b16 %v585
        %v1344 = vunpack.c.l.b16 %v586
        %v1345 = vunpack.c.h.b16 %v586
        %v1346 = vunpack.c.l.b16 %v587
        %v1347 = vunpack.c.h.b16 %v587
        %v1348 = vunpack.c.l.b16 %v588
        %v1349 = vunpack.c.h.b16 %v588
        %v1350 = vunpack.c.l.b16 %v589
        %v1351 = vunpack.c.h.b16 %v589
        %v1352 = vunpack.c.l.b16 %v590
        %v1353 = vunpack.c.h.b16 %v590
        %v1354 = vunpack.c.l.b16 %v591
        %v1355 = vunpack.c.h.b16 %v591
        %v1356 = vunpack.c.l.b16 %v592
        %v1357 = vunpack.c.h.b16 %v592
        %v1358 = vunpack.c.l.b16 %v593
        %v1359 = vunpack.c.h.b16 %v593
        %v1360 = vunpack.c.l.b16 %v594
        %v1361 = vunpack.c.h.b16 %v594
        %v1362 = vunpack.c.l.b16 %v595
        %v1363 = vunpack.c.h.b16 %v595
        %v1364 = vunpack.c.l.b16 %v596
        %v1365 = vunpack.c.h.b16 %v596
        %v1366 = vunpack.c.l.b16 %v597
        %v1367 = vunpack.c.h.b16 %v597
        %v1368 = vunpack.c.l.b16 %v598
        %v1369 = vunpack.c.h.b16 %v598
        %v1370 = vunpack.c.l.b16 %v599
        %v1371 = vunpack.c.h.b16 %v599
        %v1372 = vunpack.c.l.b16 %v600
        %v1373 = vunpack.c.h.b16 %v600
        %v1374 = vunpack.c.l.b16 %v601
        %v1375 = vunpack.c.h.b16 %v601
        %v1376 = vunpack.c.l.b16 %v602
        %v1377 = vunpack.c.h.b16 %v602
        %v1378 = vunpack.c.l.b16 %v603
        %v1379 = vunpack.c.h.b16 %v603
        %v1380 = vunpack.c.l.b16 %v604
        %v1381 = vunpack.c.h.b16 %v604
        %v1382 = vunpack.c.l.b16 %v605
        %v1383 = vunpack.c.h.b16 %v605
        %v1384 = vunpack.c.l.b16 %v606
        %v1385 = vunpack.c.h.b16 %v606
        %v1386 = vunpack.c.l.b16 %v607
        %v1387 = vunpack.c.h.b16 %v607
        %v1388 = vunpack.c.l.b16 %v608
        %v1389 = vunpack.c.h.b16 %v608
        %v1390 = vunpack.c.l.b16 %v609
        %v1391 = vunpack.c.h.b16 %v609
        %v1392 = vunpack.c.l.b16 %v610
        %v1393 = vunpack.c.h.b16 %v610
        %v1394 = vunpack.c.l.b16 %v611
        %v1395 = vunpack.c.h.b16 %v611
        %v1396 = vunpack.c.l.b16 %v612
        %v1397 = vunpack.c.h.b16 %v612
        %v1398 = vunpack.c.l.b16 %v613
        %v1399 = vunpack.c.h.b16 %v613
        %v1400 = vpack.c.b16 %v896, %v888
        %v1401 = vpack.c.b16 %v897, %v889
        %v1402 = vpack.c.b16 %v898, %v890
        %v1403 = vpack.c.b16 %v899, %v891
        %v1404 = vpack.c.b16 %v900, %v892
        %v1405 = vpack.c.b16 %v901, %v893
        %v1406 = vpack.c.b16 %v902, %v894
        %v1407 = vpack.c.b16 %v903, %v895
        %v1408 = vpack.c.b16 %v912, %v904
        %v1409 = vpack.c.b16 %v913, %v905
        %v1410 = vpack.c.b16 %v914, %v906
        %v1411 = vpack.c.b16 %v915, %v907
        %v1412 = vpack.c.b16 %v916, %v908
        %v1413 = vpack.c.b16 %v917, %v909
        %v1414 = vpack.c.b16 %v918, %v910
        %v1415 = vpack.c.b16 %v919, %v911
        %v1416 = vpack.c.b16 %v928, %v920
        %v1417 = vpack.c.b16 %v929, %v921
        %v1418 = vpack.c.b16 %v930, %v922
        %v1419 = vpack.c.b16 %v931, %v923
        %v1420 = vpack.c.b16 %v932, %v924
        %v1421 = vpack.c.b16 %v933, %v925
        %v1422 = vpack.c.b16 %v934, %v926
        %v1423 = vpack.c.b16 %v935, %v927
        %v1424 = vpack.c.b16 %v944, %v936
        %v1425 = vpack.c.b16 %v945, %v937
        %v1426 = vpack.c.b16 %v946, %v938
        %v1427 = vpack.c.b16 %v947, %v939
        %v1428 = vpack.c.b16 %v948, %v940
        %v1429 = vpack.c.b16 %v949, %v941
        %v1430 = vpack.c.b16 %v950, %v942
        %v1431 = vpack.c.b16 %v951, %v943
        %v1432 = vpack.c.b16 %v960, %v952
        %v1433 = vpack.c.b16 %v961, %v953
        %v1434 = vpack.c.b16 %v962, %v954
        %v1435 = vpack.c.b16 %v963, %v955
        %v1436 = vpack.c.b16 %v964, %v956
        %v1437 = vpack.c.b16 %v965, %v957
        %v1438 = vpack.c.b16 %v966, %v958
        %v1439 = vpack.c.b16 %v967, %v959
        %v1440 = vpack.c.b16 %v976, %v968
        %v1441 = vpack.c.b16 %v977, %v969
        %v1442 = vpack.c.b16 %v978, %v970
        %v1443 = vpack.c.b16 %v979, %v971
        %v1444 = vpack.c.b16 %v980, %v972
        %v1445 = vpack.c.b16 %v981, %v973
        %v1446 = vpack.c.b16 %v982, %v974
        %v1447 = vpack.c.b16 %v983, %v975
        %v1448 = vpack.c.b16 %v992, %v984
        %v1449 = vpack.c.b16 %v993, %v985
        %v1450 = vpack.c.b16 %v994, %v986
        %v1451 = vpack.c.b16 %v995, %v987
        %v1452 = vpack.c.b16 %v996, %v988
        %v1453 = vpack.c.b16 %v997, %v989
        %v1454 = vpack.c.b16 %v998, %v990
        %v1455 = vpack.c.b16 %v999, %v991
        %v1456 = vpack.c.b16 %v1008, %v1000
        %v1457 = vpack.c.b16 %v1009, %v1001
        %v1458 = vpack.c.b16 %v1010, %v1002
        %v1459 = vpack.c.b16 %v1011, %v1003
        %v1460 = vpack.c.b16 %v1012, %v1004
        %v1461 = vpack.c.b16 %v1013, %v1005
        %v1462 = vpack.c.b16 %v1014, %v1006
        %v1463 = vpack.c.b16 %v1015, %v1007
        %v1464 = vpack.c.b16 %v1024, %v1016
        %v1465 = vpack.c.b16 %v1025, %v1017
        %v1466 = vpack.c.b16 %v1026, %v1018
        %v1467 = vpack.c.b16 %v1027, %v1019
        %v1468 = vpack.c.b16 %v1028, %v1020
        %v1469 = vpack.c.b16 %v1029, %v1021
        %v1470 = vpack.c.b16 %v1030, %v1022
        %v1471 = vpack.c.b16 %v1031, %v1023
        %v1472 = vpack.c.b16 %v1040, %v1032
        %v1473 = vpack.c.b16 %v1041, %v1033
        %v1474 = vpack.c.b16 %v1042, %v1034
        %v1475 = vpack.c.b16 %v1043, %v1035
        %v1476 = vpack.c.b16 %v1044, %v1036
        %v1477 = vpack.c.b16 %v1045, %v1037
        %v1478 = vpack.c.b16 %v1046, %v1038
        %v1479 = vpack.c.b16 %v1047, %v1039
        %v1480 = vpack.c.b16 %v1056, %v1048
        %v1481 = vpack.c.b16 %v1057, %v1049
        %v1482 = vpack.c.b16 %v1058, %v1050
        %v1483 = vpack.c.b16 %v1059, %v1051
        %v1484 = vpack.c.b16 %v1060, %v1052
        %v1485 = vpack.c.b16 %v1061, %v1053
        %v1486 = vpack.c.b16 %v1062, %v1054
        %v1487 = vpack.c.b16 %v1063, %v1055
        %v1488 = vpack.c.b16 %v1072, %v1064
        %v1489 = vpack.c.b16 %v1073, %v1065
        %v1490 = vpack.c.b16 %v1074, %v1066
        %v1491 = vpack.c.b16 %v1075, %v1067
        %v1492 = vpack.c.b16 %v1076, %v1068
        %v1493 = vpack.c.b16 %v1077, %v1069
        %v1494 = vpack.c.b16 %v1078, %v1070
        %v1495 = vpack.c.b16 %v1079, %v1071
        %v1496 = vpack.c.b16 %v1088, %v1080
        %v1497 = vpack.c.b16 %v1089, %v1081
        %v1498 = vpack.c.b16 %v1090, %v1082
        %v1499 = vpack.c.b16 %v1091, %v1083
        %v1500 = vpack.c.b16 %v1092, %v1084
        %v1501 = vpack.c.b16 %v1093, %v1085
        %v1502 = vpack.c.b16 %v1094, %v1086
        %v1503 = vpack.c.b16 %v1095, %v1087
        %v1504 = vpack.c.b16 %v1104, %v1096
        %v1505 = vpack.c.b16 %v1105, %v1097
        %v1506 = vpack.c.b16 %v1106, %v1098
        %v1507 = vpack.c.b16 %v1107, %v1099
        %v1508 = vpack.c.b16 %v1108, %v1100
        %v1509 = vpack.c.b16 %v1109, %v1101
        %v1510 = vpack.c.b16 %v1110, %v1102
        %v1511 = vpack.c.b16 %v1111, %v1103
        %v1512 = vpack.c.b16 %v1120, %v1112
        %v1513 = vpack.c.b16 %v1121, %v1113
        %v1514 = vpack.c.b16 %v1122, %v1114
        %v1515 = vpack.c.b16 %v1123, %v1115
        %v1516 = vpack.c.b16 %v1124, %v1116
        %v1517 = vpack.c.b16 %v1125, %v1117
        %v1518 = vpack.c.b16 %v1126, %v1118
        %v1519 = vpack.c.b16 %v1127, %v1119
        %v1520 = vpack.c.b16 %v1136, %v1128
        %v1521 = vpack.c.b16 %v1137, %v1129
        %v1522 = vpack.c.b16 %v1138, %v1130
        %v1523 = vpack.c.b16 %v1139, %v1131
        %v1524 = vpack.c.b16 %v1140, %v1132
        %v1525 = vpack.c.b16 %v1141, %v1133
        %v1526 = vpack.c.b16 %v1142, %v1134
        %v1527 = vpack.c.b16 %v1143, %v1135
        %v1528 = vpack.c.b16 %v1152, %v1144
        %v1529 = vpack.c.b16 %v1153, %v1145
        %v1530 = vpack.c.b16 %v1154, %v1146
        %v1531 = vpack.c.b16 %v1155, %v1147
        %v1532 = vpack.c.b16 %v1156, %v1148
        %v1533 = vpack.c.b16 %v1157, %v1149
        %v1534 = vpack.c.b16 %v1158, %v1150
        %v1535 = vpack.c.b16 %v1159, %v1151
        %v1536 = vpack.c.b16 %v1168, %v1160
        %v1537 = vpack.c.b16 %v1169, %v1161
        %v1538 = vpack.c.b16 %v1170, %v1162
        %v1539 = vpack.c.b16 %v1171, %v1163
        %v1540 = vpack.c.b16 %v1172, %v1164
        %v1541 = vpack.c.b16 %v1173, %v1165
        %v1542 = vpack.c.b16 %v1174, %v1166
        %v1543 = vpack.c.b16 %v1175, %v1167
        %v1544 = vpack.c.b16 %v1184, %v1176
        %v1545 = vpack.c.b16 %v1185, %v1177
        %v1546 = vpack.c.b16 %v1186, %v1178
        %v1547 = vpack.c.b16 %v1187, %v1179
        %v1548 = vpack.c.b16 %v1188, %v1180
        %v1549 = vpack.c.b16 %v1189, %v1181
        %v1550 = vpack.c.b16 %v1190, %v1182
        %v1551 = vpack.c.b16 %v1191, %v1183
        %v1552 = vpack.c.b16 %v1200, %v1192
        %v1553 = vpack.c.b16 %v1201, %v1193
        %v1554 = vpack.c.b16 %v1202, %v1194
        %v1555 = vpack.c.b16 %v1203, %v1195
        %v1556 = vpack.c.b16 %v1204, %v1196
        %v1557 = vpack.c.b16 %v1205, %v1197
        %v1558 = vpack.c.b16 %v1206, %v1198
        %v1559 = vpack.c.b16 %v1207, %v1199
        %v1560 = vpack.c.b16 %v1216, %v1208
        %v1561 = vpack.c.b16 %v1217, %v1209
        %v1562 = vpack.c.b16 %v1218, %v1210
        %v1563 = vpack.c.b16 %v1219, %v1211
        %v1564 = vpack.c.b16 %v1220, %v1212
        %v1565 = vpack.c.b16 %v1221, %v1213
        %v1566 = vpack.c.b16 %v1222, %v1214
        %v1567 = vpack.c.b16 %v1223, %v1215
        %v1568 = vpack.c.b16 %v1232, %v1224
        %v1569 = vpack.c.b16 %v1233, %v1225
        %v1570 = vpack.c.b16 %v1234, %v1226
        %v1571 = vpack.c.b16 %v1235, %v1227
        %v1572 = vpack.c.b16 %v1236, %v1228
        %v1573 = vpack.c.b16 %v1237, %v1229
        %v1574 = vpack.c.b16 %v1238, %v1230
        %v1575 = vpack.c.b16 %v1239, %v1231
        %v1576 = vpack.c.b16 %v1248, %v1240
        %v1577 = vpack.c.b16 %v1249, %v1241
        %v1578 = vpack.c.b16 %v1250, %v1242
        %v1579 = vpack.c.b16 %v1251, %v1243
        %v1580 = vpack.c.b16 %v1252, %v1244
        %v1581 = vpack.c.b16 %v1253, %v1245
        %v1582 = vpack.c.b16 %v1254, %v1246
        %v1583 = vpack.c.b16 %v1255, %v1247
        %v1584 = vpack.c.b16 %v1264, %v1256
        %v1585 = vpack.c.b16 %v1265, %v1257
        %v1586 = vpack.c.b16 %v1266, %v1258
        %v1587 = vpack.c.b16 %v1267, %v1259
        %v1588 = vpack.c.b16 %v1268, %v1260
        %v1589 = vpack.c.b16 %v1269, %v1261
        %v1590 = vpack.c.b16 %v1270, %v1262
        %v1591 = vpack.c.b16 %v1271, %v1263
        %v1592 = vpack.c.b16 %v1280, %v1272
        %v1593 = vpack.c.b16 %v1281, %v1273
        %v1594 = vpack.c.b16 %v1282, %v1274
        %v1595 = vpack.c.b16 %v1283, %v1275
        %v1596 = vpack.c.b16 %v1284, %v1276
        %v1597 = vpack.c.b16 %v1285, %v1277
        %v1598 = vpack.c.b16 %v1286, %v1278
        %v1599 = vpack.c.b16 %v1287, %v1279
        %v1600 = vpack.c.b16 %v1296, %v1288
        %v1601 = vpack.c.b16 %v1297, %v1289
        %v1602 = vpack.c.b16 %v1298, %v1290
        %v1603 = vpack.c.b16 %v1299, %v1291
        %v1604 = vpack.c.b16 %v1300, %v1292
        %v1605 = vpack.c.b16 %v1301, %v1293
        %v1606 = vpack.c.b16 %v1302, %v1294
        %v1607 = vpack.c.b16 %v1303, %v1295
        %v1608 = vpack.c.b16 %v1312, %v1304
        %v1609 = vpack.c.b16 %v1313, %v1305
        %v1610 = vpack.c.b16 %v1314, %v1306
        %v1611 = vpack.c.b16 %v1315, %v1307
        %v1612 = vpack.c.b16 %v1316, %v1308
        %v1613 = vpack.c.b16 %v1317, %v1309
        %v1614 = vpack.c.b16 %v1318, %v1310
        %v1615 = vpack.c.b16 %v1319, %v1311
        %v1616 = vpack.c.b16 %v1328, %v1320
        %v1617 = vpack.c.b16 %v1329, %v1321
        %v1618 = vpack.c.b16 %v1330, %v1322
        %v1619 = vpack.c.b16 %v1331, %v1323
        %v1620 = vpack.c.b16 %v1332, %v1324
        %v1621 = vpack.c.b16 %v1333, %v1325
        %v1622 = vpack.c.b16 %v1334, %v1326
        %v1623 = vpack.c.b16 %v1335, %v1327
        %v1624 = vpack.c.b16 %v1344, %v1336
        %v1625 = vpack.c.b16 %v1345, %v1337
        %v1626 = vpack.c.b16 %v1346, %v1338
        %v1627 = vpack.c.b16 %v1347, %v1339
        %v1628 = vpack.c.b16 %v1348, %v1340
        %v1629 = vpack.c.b16 %v1349, %v1341
        %v1630 = vpack.c.b16 %v1350, %v1342
        %v1631 = vpack.c.b16 %v1351, %v1343
        %v1632 = vpack.c.b16 %v1360, %v1352
        %v1633 = vpack.c.b16 %v1361, %v1353
        %v1634 = vpack.c.b16 %v1362, %v1354
        %v1635 = vpack.c.b16 %v1363, %v1355
        %v1636 = vpack.c.b16 %v1364, %v1356
        %v1637 = vpack.c.b16 %v1365, %v1357
        %v1638 = vpack.c.b16 %v1366, %v1358
        %v1639 = vpack.c.b16 %v1367, %v1359
        %v1640 = vpack.c.b16 %v1376, %v1368
        %v1641 = vpack.c.b16 %v1377, %v1369
        %v1642 = vpack.c.b16 %v1378, %v1370
        %v1643 = vpack.c.b16 %v1379, %v1371
        %v1644 = vpack.c.b16 %v1380, %v1372
        %v1645 = vpack.c.b16 %v1381, %v1373
        %v1646 = vpack.c.b16 %v1382, %v1374
        %v1647 = vpack.c.b16 %v1383, %v1375
        %v1648 = vpack.c.b16 %v1392, %v1384
        %v1649 = vpack.c.b16 %v1393, %v1385
        %v1650 = vpack.c.b16 %v1394, %v1386
        %v1651 = vpack.c.b16 %v1395, %v1387
        %v1652 = vpack.c.b16 %v1396, %v1388
        %v1653 = vpack.c.b16 %v1397, %v1389
        %v1654 = vpack.c.b16 %v1398, %v1390
        %v1655 = vpack.c.b16 %v1399, %v1391
        %1912 = vmatpush.bf16.msra.mxu0 %v1456
        %1913 = vmatpush.bf16.msra.mxu0 %v1448
        %1914 = vmatpush.bf16.msra.mxu0 %v1440
        %1915 = vmatpush.bf16.msra.mxu0 %v1432
        %1916 = vmatpush.bf16.msra.mxu0 %v1424
        %1917 = vmatpush.bf16.msra.mxu0 %v1416
        %1918 = vmatpush.bf16.msra.mxu0 %v1408
        %1919 = vmatpush.bf16.msra.mxu0 %v1400
        %1920 = vmatmul.bf16.gmra.mxu0 %v354
        %v1921 = vpop.f32.mrf.mxu0
        %v1922 = vadd.f32 %v616, %v1921
        %v1923 = vpop.f32.mrf.mxu0
        %1924 = vdwg.mxu0
        %1925 = vmatpush.bf16.msra.mxu0 %v1520
        %1926 = vmatpush.bf16.msra.mxu0 %v1512
        %1927 = vmatpush.bf16.msra.mxu0 %v1504
        %1928 = vmatpush.bf16.msra.mxu0 %v1496
        %1929 = vmatpush.bf16.msra.mxu0 %v1488
        %1930 = vmatpush.bf16.msra.mxu0 %v1480
        %1931 = vmatpush.bf16.msra.mxu0 %v1472
        %1932 = vmatpush.bf16.msra.mxu0 %v1464
        %1933 = vmatmul.bf16.gmra.mxu0 %v355
        %v1934 = vpop.f32.mrf.mxu0
        %v1935 = vadd.f32 %v1922, %v1934
        %v1936 = vpop.f32.mrf.mxu0
        %1937 = vdwg.mxu0
        %1938 = vmatpush.bf16.msra.mxu0 %v1584
        %1939 = vmatpush.bf16.msra.mxu0 %v1576
        %1940 = vmatpush.bf16.msra.mxu0 %v1568
        %1941 = vmatpush.bf16.msra.mxu0 %v1560
        %1942 = vmatpush.bf16.msra.mxu0 %v1552
        %1943 = vmatpush.bf16.msra.mxu0 %v1544
        %1944 = vmatpush.bf16.msra.mxu0 %v1536
        %1945 = vmatpush.bf16.msra.mxu0 %v1528
        %1946 = vmatmul.bf16.gmra.mxu0 %v356
        %v1947 = vpop.f32.mrf.mxu0
        %v1948 = vadd.f32 %v1935, %v1947
        %v1949 = vpop.f32.mrf.mxu0
        %1950 = vdwg.mxu0
        %1951 = vmatpush.bf16.msra.mxu0 %v1648
        %1952 = vmatpush.bf16.msra.mxu0 %v1640
        %1953 = vmatpush.bf16.msra.mxu0 %v1632
        %1954 = vmatpush.bf16.msra.mxu0 %v1624
        %1955 = vmatpush.bf16.msra.mxu0 %v1616
        %1956 = vmatpush.bf16.msra.mxu0 %v1608
        %1957 = vmatpush.bf16.msra.mxu0 %v1600
        %1958 = vmatpush.bf16.msra.mxu0 %v1592
        %1959 = vmatmul.bf16.gmra.mxu0 %v357
        %v1960 = vpop.f32.mrf.mxu0
        %v1961 = vadd.f32 %v1948, %v1960
        %v1962 = vpop.f32.mrf.mxu0
        %1963 = vdwg.mxu0
        %1964 = vmatpush.bf16.msra.mxu0 %v1457
        %1965 = vmatpush.bf16.msra.mxu0 %v1449
        %1966 = vmatpush.bf16.msra.mxu0 %v1441
        %1967 = vmatpush.bf16.msra.mxu0 %v1433
        %1968 = vmatpush.bf16.msra.mxu0 %v1425
        %1969 = vmatpush.bf16.msra.mxu0 %v1417
        %1970 = vmatpush.bf16.msra.mxu0 %v1409
        %1971 = vmatpush.bf16.msra.mxu0 %v1401
        %1972 = vmatmul.bf16.gmra.mxu0 %v354
        %v1973 = vpop.f32.mrf.mxu0
        %v1974 = vadd.f32 %v617, %v1973
        %v1975 = vpop.f32.mrf.mxu0
        %1976 = vdwg.mxu0
        %1977 = vmatpush.bf16.msra.mxu0 %v1521
        %1978 = vmatpush.bf16.msra.mxu0 %v1513
        %1979 = vmatpush.bf16.msra.mxu0 %v1505
        %1980 = vmatpush.bf16.msra.mxu0 %v1497
        %1981 = vmatpush.bf16.msra.mxu0 %v1489
        %1982 = vmatpush.bf16.msra.mxu0 %v1481
        %1983 = vmatpush.bf16.msra.mxu0 %v1473
        %1984 = vmatpush.bf16.msra.mxu0 %v1465
        %1985 = vmatmul.bf16.gmra.mxu0 %v355
        %v1986 = vpop.f32.mrf.mxu0
        %v1987 = vadd.f32 %v1974, %v1986
        %v1988 = vpop.f32.mrf.mxu0
        %1989 = vdwg.mxu0
        %1990 = vmatpush.bf16.msra.mxu0 %v1585
        %1991 = vmatpush.bf16.msra.mxu0 %v1577
        %1992 = vmatpush.bf16.msra.mxu0 %v1569
        %1993 = vmatpush.bf16.msra.mxu0 %v1561
        %1994 = vmatpush.bf16.msra.mxu0 %v1553
        %1995 = vmatpush.bf16.msra.mxu0 %v1545
        %1996 = vmatpush.bf16.msra.mxu0 %v1537
        %1997 = vmatpush.bf16.msra.mxu0 %v1529
        %1998 = vmatmul.bf16.gmra.mxu0 %v356
        %v1999 = vpop.f32.mrf.mxu0
        %v2000 = vadd.f32 %v1987, %v1999
        %v2001 = vpop.f32.mrf.mxu0
        %2002 = vdwg.mxu0
        %2003 = vmatpush.bf16.msra.mxu0 %v1649
        %2004 = vmatpush.bf16.msra.mxu0 %v1641
        %2005 = vmatpush.bf16.msra.mxu0 %v1633
        %2006 = vmatpush.bf16.msra.mxu0 %v1625
        %2007 = vmatpush.bf16.msra.mxu0 %v1617
        %2008 = vmatpush.bf16.msra.mxu0 %v1609
        %2009 = vmatpush.bf16.msra.mxu0 %v1601
        %2010 = vmatpush.bf16.msra.mxu0 %v1593
        %2011 = vmatmul.bf16.gmra.mxu0 %v357
        %v2012 = vpop.f32.mrf.mxu0
        %v2013 = vadd.f32 %v2000, %v2012
        %v2014 = vpop.f32.mrf.mxu0
        %2015 = vdwg.mxu0
        %2016 = vmatpush.bf16.msra.mxu0 %v1458
        %2017 = vmatpush.bf16.msra.mxu0 %v1450
        %2018 = vmatpush.bf16.msra.mxu0 %v1442
        %2019 = vmatpush.bf16.msra.mxu0 %v1434
        %2020 = vmatpush.bf16.msra.mxu0 %v1426
        %2021 = vmatpush.bf16.msra.mxu0 %v1418
        %2022 = vmatpush.bf16.msra.mxu0 %v1410
        %2023 = vmatpush.bf16.msra.mxu0 %v1402
        %2024 = vmatmul.bf16.gmra.mxu0 %v354
        %v2025 = vpop.f32.mrf.mxu0
        %v2026 = vadd.f32 %v618, %v2025
        %v2027 = vpop.f32.mrf.mxu0
        %2028 = vdwg.mxu0
        %2029 = vmatpush.bf16.msra.mxu0 %v1522
        %2030 = vmatpush.bf16.msra.mxu0 %v1514
        %2031 = vmatpush.bf16.msra.mxu0 %v1506
        %2032 = vmatpush.bf16.msra.mxu0 %v1498
        %2033 = vmatpush.bf16.msra.mxu0 %v1490
        %2034 = vmatpush.bf16.msra.mxu0 %v1482
        %2035 = vmatpush.bf16.msra.mxu0 %v1474
        %2036 = vmatpush.bf16.msra.mxu0 %v1466
        %2037 = vmatmul.bf16.gmra.mxu0 %v355
        %v2038 = vpop.f32.mrf.mxu0
        %v2039 = vadd.f32 %v2026, %v2038
        %v2040 = vpop.f32.mrf.mxu0
        %2041 = vdwg.mxu0
        %2042 = vmatpush.bf16.msra.mxu0 %v1586
        %2043 = vmatpush.bf16.msra.mxu0 %v1578
        %2044 = vmatpush.bf16.msra.mxu0 %v1570
        %2045 = vmatpush.bf16.msra.mxu0 %v1562
        %2046 = vmatpush.bf16.msra.mxu0 %v1554
        %2047 = vmatpush.bf16.msra.mxu0 %v1546
        %2048 = vmatpush.bf16.msra.mxu0 %v1538
        %2049 = vmatpush.bf16.msra.mxu0 %v1530
        %2050 = vmatmul.bf16.gmra.mxu0 %v356
        %v2051 = vpop.f32.mrf.mxu0
        %v2052 = vadd.f32 %v2039, %v2051
        %v2053 = vpop.f32.mrf.mxu0
        %2054 = vdwg.mxu0
        %2055 = vmatpush.bf16.msra.mxu0 %v1650
        %2056 = vmatpush.bf16.msra.mxu0 %v1642
        %2057 = vmatpush.bf16.msra.mxu0 %v1634
        %2058 = vmatpush.bf16.msra.mxu0 %v1626
        %2059 = vmatpush.bf16.msra.mxu0 %v1618
        %2060 = vmatpush.bf16.msra.mxu0 %v1610
        %2061 = vmatpush.bf16.msra.mxu0 %v1602
        %2062 = vmatpush.bf16.msra.mxu0 %v1594
        %2063 = vmatmul.bf16.gmra.mxu0 %v357
        %v2064 = vpop.f32.mrf.mxu0
        %v2065 = vadd.f32 %v2052, %v2064
        %v2066 = vpop.f32.mrf.mxu0
        %2067 = vdwg.mxu0
        %2068 = vmatpush.bf16.msra.mxu0 %v1459
        %2069 = vmatpush.bf16.msra.mxu0 %v1451
        %2070 = vmatpush.bf16.msra.mxu0 %v1443
        %2071 = vmatpush.bf16.msra.mxu0 %v1435
        %2072 = vmatpush.bf16.msra.mxu0 %v1427
        %2073 = vmatpush.bf16.msra.mxu0 %v1419
        %2074 = vmatpush.bf16.msra.mxu0 %v1411
        %2075 = vmatpush.bf16.msra.mxu0 %v1403
        %2076 = vmatmul.bf16.gmra.mxu0 %v354
        %v2077 = vpop.f32.mrf.mxu0
        %v2078 = vadd.f32 %v619, %v2077
        %v2079 = vpop.f32.mrf.mxu0
        %2080 = vdwg.mxu0
        %2081 = vmatpush.bf16.msra.mxu0 %v1523
        %2082 = vmatpush.bf16.msra.mxu0 %v1515
        %2083 = vmatpush.bf16.msra.mxu0 %v1507
        %2084 = vmatpush.bf16.msra.mxu0 %v1499
        %2085 = vmatpush.bf16.msra.mxu0 %v1491
        %2086 = vmatpush.bf16.msra.mxu0 %v1483
        %2087 = vmatpush.bf16.msra.mxu0 %v1475
        %2088 = vmatpush.bf16.msra.mxu0 %v1467
        %2089 = vmatmul.bf16.gmra.mxu0 %v355
        %v2090 = vpop.f32.mrf.mxu0
        %v2091 = vadd.f32 %v2078, %v2090
        %v2092 = vpop.f32.mrf.mxu0
        %2093 = vdwg.mxu0
        %2094 = vmatpush.bf16.msra.mxu0 %v1587
        %2095 = vmatpush.bf16.msra.mxu0 %v1579
        %2096 = vmatpush.bf16.msra.mxu0 %v1571
        %2097 = vmatpush.bf16.msra.mxu0 %v1563
        %2098 = vmatpush.bf16.msra.mxu0 %v1555
        %2099 = vmatpush.bf16.msra.mxu0 %v1547
        %2100 = vmatpush.bf16.msra.mxu0 %v1539
        %2101 = vmatpush.bf16.msra.mxu0 %v1531
        %2102 = vmatmul.bf16.gmra.mxu0 %v356
        %v2103 = vpop.f32.mrf.mxu0
        %v2104 = vadd.f32 %v2091, %v2103
        %v2105 = vpop.f32.mrf.mxu0
        %2106 = vdwg.mxu0
        %2107 = vmatpush.bf16.msra.mxu0 %v1651
        %2108 = vmatpush.bf16.msra.mxu0 %v1643
        %2109 = vmatpush.bf16.msra.mxu0 %v1635
        %2110 = vmatpush.bf16.msra.mxu0 %v1627
        %2111 = vmatpush.bf16.msra.mxu0 %v1619
        %2112 = vmatpush.bf16.msra.mxu0 %v1611
        %2113 = vmatpush.bf16.msra.mxu0 %v1603
        %2114 = vmatpush.bf16.msra.mxu0 %v1595
        %2115 = vmatmul.bf16.gmra.mxu0 %v357
        %v2116 = vpop.f32.mrf.mxu0
        %v2117 = vadd.f32 %v2104, %v2116
        %v2118 = vpop.f32.mrf.mxu0
        %2119 = vdwg.mxu0
        %2120 = vmatpush.bf16.msra.mxu0 %v1460
        %2121 = vmatpush.bf16.msra.mxu0 %v1452
        %2122 = vmatpush.bf16.msra.mxu0 %v1444
        %2123 = vmatpush.bf16.msra.mxu0 %v1436
        %2124 = vmatpush.bf16.msra.mxu0 %v1428
        %2125 = vmatpush.bf16.msra.mxu0 %v1420
        %2126 = vmatpush.bf16.msra.mxu0 %v1412
        %2127 = vmatpush.bf16.msra.mxu0 %v1404
        %2128 = vmatmul.bf16.gmra.mxu0 %v354
        %v2129 = vpop.f32.mrf.mxu0
        %v2130 = vadd.f32 %v620, %v2129
        %v2131 = vpop.f32.mrf.mxu0
        %2132 = vdwg.mxu0
        %2133 = vmatpush.bf16.msra.mxu0 %v1524
        %2134 = vmatpush.bf16.msra.mxu0 %v1516
        %2135 = vmatpush.bf16.msra.mxu0 %v1508
        %2136 = vmatpush.bf16.msra.mxu0 %v1500
        %2137 = vmatpush.bf16.msra.mxu0 %v1492
        %2138 = vmatpush.bf16.msra.mxu0 %v1484
        %2139 = vmatpush.bf16.msra.mxu0 %v1476
        %2140 = vmatpush.bf16.msra.mxu0 %v1468
        %2141 = vmatmul.bf16.gmra.mxu0 %v355
        %v2142 = vpop.f32.mrf.mxu0
        %v2143 = vadd.f32 %v2130, %v2142
        %v2144 = vpop.f32.mrf.mxu0
        %2145 = vdwg.mxu0
        %2146 = vmatpush.bf16.msra.mxu0 %v1588
        %2147 = vmatpush.bf16.msra.mxu0 %v1580
        %2148 = vmatpush.bf16.msra.mxu0 %v1572
        %2149 = vmatpush.bf16.msra.mxu0 %v1564
        %2150 = vmatpush.bf16.msra.mxu0 %v1556
        %2151 = vmatpush.bf16.msra.mxu0 %v1548
        %2152 = vmatpush.bf16.msra.mxu0 %v1540
        %2153 = vmatpush.bf16.msra.mxu0 %v1532
        %2154 = vmatmul.bf16.gmra.mxu0 %v356
        %v2155 = vpop.f32.mrf.mxu0
        %v2156 = vadd.f32 %v2143, %v2155
        %v2157 = vpop.f32.mrf.mxu0
        %2158 = vdwg.mxu0
        %2159 = vmatpush.bf16.msra.mxu0 %v1652
        %2160 = vmatpush.bf16.msra.mxu0 %v1644
        %2161 = vmatpush.bf16.msra.mxu0 %v1636
        %2162 = vmatpush.bf16.msra.mxu0 %v1628
        %2163 = vmatpush.bf16.msra.mxu0 %v1620
        %2164 = vmatpush.bf16.msra.mxu0 %v1612
        %2165 = vmatpush.bf16.msra.mxu0 %v1604
        %2166 = vmatpush.bf16.msra.mxu0 %v1596
        %2167 = vmatmul.bf16.gmra.mxu0 %v357
        %v2168 = vpop.f32.mrf.mxu0
        %v2169 = vadd.f32 %v2156, %v2168
        %v2170 = vpop.f32.mrf.mxu0
        %2171 = vdwg.mxu0
        %2172 = vmatpush.bf16.msra.mxu0 %v1461
        %2173 = vmatpush.bf16.msra.mxu0 %v1453
        %2174 = vmatpush.bf16.msra.mxu0 %v1445
        %2175 = vmatpush.bf16.msra.mxu0 %v1437
        %2176 = vmatpush.bf16.msra.mxu0 %v1429
        %2177 = vmatpush.bf16.msra.mxu0 %v1421
        %2178 = vmatpush.bf16.msra.mxu0 %v1413
        %2179 = vmatpush.bf16.msra.mxu0 %v1405
        %2180 = vmatmul.bf16.gmra.mxu0 %v354
        %v2181 = vpop.f32.mrf.mxu0
        %v2182 = vadd.f32 %v621, %v2181
        %v2183 = vpop.f32.mrf.mxu0
        %2184 = vdwg.mxu0
        %2185 = vmatpush.bf16.msra.mxu0 %v1525
        %2186 = vmatpush.bf16.msra.mxu0 %v1517
        %2187 = vmatpush.bf16.msra.mxu0 %v1509
        %2188 = vmatpush.bf16.msra.mxu0 %v1501
        %2189 = vmatpush.bf16.msra.mxu0 %v1493
        %2190 = vmatpush.bf16.msra.mxu0 %v1485
        %2191 = vmatpush.bf16.msra.mxu0 %v1477
        %2192 = vmatpush.bf16.msra.mxu0 %v1469
        %2193 = vmatmul.bf16.gmra.mxu0 %v355
        %v2194 = vpop.f32.mrf.mxu0
        %v2195 = vadd.f32 %v2182, %v2194
        %v2196 = vpop.f32.mrf.mxu0
        %2197 = vdwg.mxu0
        %2198 = vmatpush.bf16.msra.mxu0 %v1589
        %2199 = vmatpush.bf16.msra.mxu0 %v1581
        %2200 = vmatpush.bf16.msra.mxu0 %v1573
        %2201 = vmatpush.bf16.msra.mxu0 %v1565
        %2202 = vmatpush.bf16.msra.mxu0 %v1557
        %2203 = vmatpush.bf16.msra.mxu0 %v1549
        %2204 = vmatpush.bf16.msra.mxu0 %v1541
        %2205 = vmatpush.bf16.msra.mxu0 %v1533
        %2206 = vmatmul.bf16.gmra.mxu0 %v356
        %v2207 = vpop.f32.mrf.mxu0
        %v2208 = vadd.f32 %v2195, %v2207
        %v2209 = vpop.f32.mrf.mxu0
        %2210 = vdwg.mxu0
        %2211 = vmatpush.bf16.msra.mxu0 %v1653
        %2212 = vmatpush.bf16.msra.mxu0 %v1645
        %2213 = vmatpush.bf16.msra.mxu0 %v1637
        %2214 = vmatpush.bf16.msra.mxu0 %v1629
        %2215 = vmatpush.bf16.msra.mxu0 %v1621
        %2216 = vmatpush.bf16.msra.mxu0 %v1613
        %2217 = vmatpush.bf16.msra.mxu0 %v1605
        %2218 = vmatpush.bf16.msra.mxu0 %v1597
        %2219 = vmatmul.bf16.gmra.mxu0 %v357
        %v2220 = vpop.f32.mrf.mxu0
        %v2221 = vadd.f32 %v2208, %v2220
        %v2222 = vpop.f32.mrf.mxu0
        %2223 = vdwg.mxu0
        %2224 = vmatpush.bf16.msra.mxu0 %v1462
        %2225 = vmatpush.bf16.msra.mxu0 %v1454
        %2226 = vmatpush.bf16.msra.mxu0 %v1446
        %2227 = vmatpush.bf16.msra.mxu0 %v1438
        %2228 = vmatpush.bf16.msra.mxu0 %v1430
        %2229 = vmatpush.bf16.msra.mxu0 %v1422
        %2230 = vmatpush.bf16.msra.mxu0 %v1414
        %2231 = vmatpush.bf16.msra.mxu0 %v1406
        %2232 = vmatmul.bf16.gmra.mxu0 %v354
        %v2233 = vpop.f32.mrf.mxu0
        %v2234 = vadd.f32 %v622, %v2233
        %v2235 = vpop.f32.mrf.mxu0
        %2236 = vdwg.mxu0
        %2237 = vmatpush.bf16.msra.mxu0 %v1526
        %2238 = vmatpush.bf16.msra.mxu0 %v1518
        %2239 = vmatpush.bf16.msra.mxu0 %v1510
        %2240 = vmatpush.bf16.msra.mxu0 %v1502
        %2241 = vmatpush.bf16.msra.mxu0 %v1494
        %2242 = vmatpush.bf16.msra.mxu0 %v1486
        %2243 = vmatpush.bf16.msra.mxu0 %v1478
        %2244 = vmatpush.bf16.msra.mxu0 %v1470
        %2245 = vmatmul.bf16.gmra.mxu0 %v355
        %v2246 = vpop.f32.mrf.mxu0
        %v2247 = vadd.f32 %v2234, %v2246
        %v2248 = vpop.f32.mrf.mxu0
        %2249 = vdwg.mxu0
        %2250 = vmatpush.bf16.msra.mxu0 %v1590
        %2251 = vmatpush.bf16.msra.mxu0 %v1582
        %2252 = vmatpush.bf16.msra.mxu0 %v1574
        %2253 = vmatpush.bf16.msra.mxu0 %v1566
        %2254 = vmatpush.bf16.msra.mxu0 %v1558
        %2255 = vmatpush.bf16.msra.mxu0 %v1550
        %2256 = vmatpush.bf16.msra.mxu0 %v1542
        %2257 = vmatpush.bf16.msra.mxu0 %v1534
        %2258 = vmatmul.bf16.gmra.mxu0 %v356
        %v2259 = vpop.f32.mrf.mxu0
        %v2260 = vadd.f32 %v2247, %v2259
        %v2261 = vpop.f32.mrf.mxu0
        %2262 = vdwg.mxu0
        %2263 = vmatpush.bf16.msra.mxu0 %v1654
        %2264 = vmatpush.bf16.msra.mxu0 %v1646
        %2265 = vmatpush.bf16.msra.mxu0 %v1638
        %2266 = vmatpush.bf16.msra.mxu0 %v1630
        %2267 = vmatpush.bf16.msra.mxu0 %v1622
        %2268 = vmatpush.bf16.msra.mxu0 %v1614
        %2269 = vmatpush.bf16.msra.mxu0 %v1606
        %2270 = vmatpush.bf16.msra.mxu0 %v1598
        %2271 = vmatmul.bf16.gmra.mxu0 %v357
        %v2272 = vpop.f32.mrf.mxu0
        %v2273 = vadd.f32 %v2260, %v2272
        %v2274 = vpop.f32.mrf.mxu0
        %2275 = vdwg.mxu0
        %2276 = vmatpush.bf16.msra.mxu0 %v1463
        %2277 = vmatpush.bf16.msra.mxu0 %v1455
        %2278 = vmatpush.bf16.msra.mxu0 %v1447
        %2279 = vmatpush.bf16.msra.mxu0 %v1439
        %2280 = vmatpush.bf16.msra.mxu0 %v1431
        %2281 = vmatpush.bf16.msra.mxu0 %v1423
        %2282 = vmatpush.bf16.msra.mxu0 %v1415
        %2283 = vmatpush.bf16.msra.mxu0 %v1407
        %2284 = vmatmul.bf16.gmra.mxu0 %v354
        %v2285 = vpop.f32.mrf.mxu0
        %v2286 = vadd.f32 %v623, %v2285
        %v2287 = vpop.f32.mrf.mxu0
        %2288 = vdwg.mxu0
        %2289 = vmatpush.bf16.msra.mxu0 %v1527
        %2290 = vmatpush.bf16.msra.mxu0 %v1519
        %2291 = vmatpush.bf16.msra.mxu0 %v1511
        %2292 = vmatpush.bf16.msra.mxu0 %v1503
        %2293 = vmatpush.bf16.msra.mxu0 %v1495
        %2294 = vmatpush.bf16.msra.mxu0 %v1487
        %2295 = vmatpush.bf16.msra.mxu0 %v1479
        %2296 = vmatpush.bf16.msra.mxu0 %v1471
        %2297 = vmatmul.bf16.gmra.mxu0 %v355
        %v2298 = vpop.f32.mrf.mxu0
        %v2299 = vadd.f32 %v2286, %v2298
        %v2300 = vpop.f32.mrf.mxu0
        %2301 = vdwg.mxu0
        %2302 = vmatpush.bf16.msra.mxu0 %v1591
        %2303 = vmatpush.bf16.msra.mxu0 %v1583
        %2304 = vmatpush.bf16.msra.mxu0 %v1575
        %2305 = vmatpush.bf16.msra.mxu0 %v1567
        %2306 = vmatpush.bf16.msra.mxu0 %v1559
        %2307 = vmatpush.bf16.msra.mxu0 %v1551
        %2308 = vmatpush.bf16.msra.mxu0 %v1543
        %2309 = vmatpush.bf16.msra.mxu0 %v1535
        %2310 = vmatmul.bf16.gmra.mxu0 %v356
        %v2311 = vpop.f32.mrf.mxu0
        %v2312 = vadd.f32 %v2299, %v2311
        %v2313 = vpop.f32.mrf.mxu0
        %2314 = vdwg.mxu0
        %2315 = vmatpush.bf16.msra.mxu0 %v1655
        %2316 = vmatpush.bf16.msra.mxu0 %v1647
        %2317 = vmatpush.bf16.msra.mxu0 %v1639
        %2318 = vmatpush.bf16.msra.mxu0 %v1631
        %2319 = vmatpush.bf16.msra.mxu0 %v1623
        %2320 = vmatpush.bf16.msra.mxu0 %v1615
        %2321 = vmatpush.bf16.msra.mxu0 %v1607
        %2322 = vmatpush.bf16.msra.mxu0 %v1599
        %2323 = vmatmul.bf16.gmra.mxu0 %v357
        %v2324 = vpop.f32.mrf.mxu0
        %v2325 = vadd.f32 %v2312, %v2324
        %v2326 = vpop.f32.mrf.mxu0
        %2327 = vdwg.mxu0
        %v2328 = vmax.f32 %v1961, 0.0
        %v2329 = vmax.f32 %v2013, 0.0
        %v2330 = vmax.f32 %v2065, 0.0
        %v2331 = vmax.f32 %v2117, 0.0
        %v2332 = vmax.f32 %v2169, 0.0
        %v2333 = vmax.f32 %v2221, 0.0
        %v2334 = vmax.f32 %v2273, 0.0
        %v2335 = vmax.f32 %v2325, 0.0
        %v2336 = vpack.c.bf16 %v2328, %v2328
        %v2337 = vpack.c.bf16 %v2329, %v2329
        %v2338 = vpack.c.bf16 %v2330, %v2330
        %v2339 = vpack.c.bf16 %v2331, %v2331
        %v2340 = vpack.c.bf16 %v2332, %v2332
        %v2341 = vpack.c.bf16 %v2333, %v2333
        %v2342 = vpack.c.bf16 %v2334, %v2334
        %v2343 = vpack.c.bf16 %v2335, %v2335
        %v2344 = vld [vmem:[%s287] sm:$0xff]
        %v2345 = vld [vmem:[%s287 + $0x8] sm:$0xff]
        %v2346 = vld [vmem:[%s287 + $0x10] sm:$0xff]
        %v2347 = vld [vmem:[%s287 + $0x18] sm:$0xff]
        %v2348 = vld [vmem:[%s287 + $0x20] sm:$0xff]
        %v2349 = vld [vmem:[%s287 + $0x28] sm:$0xff]
        %v2350 = vld [vmem:[%s287 + $0x30] sm:$0xff]
        %v2351 = vld [vmem:[%s287 + $0x38] sm:$0xff]
        %v2352 = vld [vmem:[%s287 + $0x40] sm:$0xff]
        %v2353 = vld [vmem:[%s287 + $0x48] sm:$0xff]
        %v2354 = vld [vmem:[%s287 + $0x50] sm:$0xff]
        %v2355 = vld [vmem:[%s287 + $0x58] sm:$0xff]
        %v2356 = vld [vmem:[%s287 + $0x60] sm:$0xff]
        %v2357 = vld [vmem:[%s287 + $0x68] sm:$0xff]
        %v2358 = vld [vmem:[%s287 + $0x70] sm:$0xff]
        %v2359 = vld [vmem:[%s287 + $0x78] sm:$0xff]
        %v2360 = vld [vmem:[%s287 + $0x80] sm:$0xff]
        %v2361 = vld [vmem:[%s287 + $0x88] sm:$0xff]
        %v2362 = vld [vmem:[%s287 + $0x90] sm:$0xff]
        %v2363 = vld [vmem:[%s287 + $0x98] sm:$0xff]
        %v2364 = vld [vmem:[%s287 + $0xa0] sm:$0xff]
        %v2365 = vld [vmem:[%s287 + $0xa8] sm:$0xff]
        %v2366 = vld [vmem:[%s287 + $0xb0] sm:$0xff]
        %v2367 = vld [vmem:[%s287 + $0xb8] sm:$0xff]
        %v2368 = vld [vmem:[%s287 + $0xc0] sm:$0xff]
        %v2369 = vld [vmem:[%s287 + $0xc8] sm:$0xff]
        %v2370 = vld [vmem:[%s287 + $0xd0] sm:$0xff]
        %v2371 = vld [vmem:[%s287 + $0xd8] sm:$0xff]
        %v2372 = vld [vmem:[%s287 + $0xe0] sm:$0xff]
        %v2373 = vld [vmem:[%s287 + $0xe8] sm:$0xff]
        %v2374 = vld [vmem:[%s287 + $0xf0] sm:$0xff]
        %v2375 = vld [vmem:[%s287 + $0xf8] sm:$0xff]
        %v2376 = vld [vmem:[%s287 + $0x100] sm:$0xff]
        %v2377 = vld [vmem:[%s287 + $0x108] sm:$0xff]
        %v2378 = vld [vmem:[%s287 + $0x110] sm:$0xff]
        %v2379 = vld [vmem:[%s287 + $0x118] sm:$0xff]
        %v2380 = vld [vmem:[%s287 + $0x120] sm:$0xff]
        %v2381 = vld [vmem:[%s287 + $0x128] sm:$0xff]
        %v2382 = vld [vmem:[%s287 + $0x130] sm:$0xff]
        %v2383 = vld [vmem:[%s287 + $0x138] sm:$0xff]
        %v2384 = vld [vmem:[%s287 + $0x140] sm:$0xff]
        %v2385 = vld [vmem:[%s287 + $0x148] sm:$0xff]
        %v2386 = vld [vmem:[%s287 + $0x150] sm:$0xff]
        %v2387 = vld [vmem:[%s287 + $0x158] sm:$0xff]
        %v2388 = vld [vmem:[%s287 + $0x160] sm:$0xff]
        %v2389 = vld [vmem:[%s287 + $0x168] sm:$0xff]
        %v2390 = vld [vmem:[%s287 + $0x170] sm:$0xff]
        %v2391 = vld [vmem:[%s287 + $0x178] sm:$0xff]
        %v2392 = vld [vmem:[%s287 + $0x180] sm:$0xff]
        %v2393 = vld [vmem:[%s287 + $0x188] sm:$0xff]
        %v2394 = vld [vmem:[%s287 + $0x190] sm:$0xff]
        %v2395 = vld [vmem:[%s287 + $0x198] sm:$0xff]
        %v2396 = vld [vmem:[%s287 + $0x1a0] sm:$0xff]
        %v2397 = vld [vmem:[%s287 + $0x1a8] sm:$0xff]
        %v2398 = vld [vmem:[%s287 + $0x1b0] sm:$0xff]
        %v2399 = vld [vmem:[%s287 + $0x1b8] sm:$0xff]
        %v2400 = vld [vmem:[%s287 + $0x1c0] sm:$0xff]
        %v2401 = vld [vmem:[%s287 + $0x1c8] sm:$0xff]
        %v2402 = vld [vmem:[%s287 + $0x1d0] sm:$0xff]
        %v2403 = vld [vmem:[%s287 + $0x1d8] sm:$0xff]
        %v2404 = vld [vmem:[%s287 + $0x1e0] sm:$0xff]
        %v2405 = vld [vmem:[%s287 + $0x1e8] sm:$0xff]
        %v2406 = vld [vmem:[%s287 + $0x1f0] sm:$0xff]
        %v2407 = vld [vmem:[%s287 + $0x1f8] sm:$0xff]
        %v2408 = vld [vmem:[%s287 + $0x200] sm:$0xff]
        %v2409 = vld [vmem:[%s287 + $0x208] sm:$0xff]
        %v2410 = vld [vmem:[%s287 + $0x210] sm:$0xff]
        %v2411 = vld [vmem:[%s287 + $0x218] sm:$0xff]
        %v2412 = vld [vmem:[%s287 + $0x220] sm:$0xff]
        %v2413 = vld [vmem:[%s287 + $0x228] sm:$0xff]
        %v2414 = vld [vmem:[%s287 + $0x230] sm:$0xff]
        %v2415 = vld [vmem:[%s287 + $0x238] sm:$0xff]
        %v2416 = vld [vmem:[%s287 + $0x240] sm:$0xff]
        %v2417 = vld [vmem:[%s287 + $0x248] sm:$0xff]
        %v2418 = vld [vmem:[%s287 + $0x250] sm:$0xff]
        %v2419 = vld [vmem:[%s287 + $0x258] sm:$0xff]
        %v2420 = vld [vmem:[%s287 + $0x260] sm:$0xff]
        %v2421 = vld [vmem:[%s287 + $0x268] sm:$0xff]
        %v2422 = vld [vmem:[%s287 + $0x270] sm:$0xff]
        %v2423 = vld [vmem:[%s287 + $0x278] sm:$0xff]
        %v2424 = vld [vmem:[%s287 + $0x280] sm:$0xff]
        %v2425 = vld [vmem:[%s287 + $0x288] sm:$0xff]
        %v2426 = vld [vmem:[%s287 + $0x290] sm:$0xff]
        %v2427 = vld [vmem:[%s287 + $0x298] sm:$0xff]
        %v2428 = vld [vmem:[%s287 + $0x2a0] sm:$0xff]
        %v2429 = vld [vmem:[%s287 + $0x2a8] sm:$0xff]
        %v2430 = vld [vmem:[%s287 + $0x2b0] sm:$0xff]
        %v2431 = vld [vmem:[%s287 + $0x2b8] sm:$0xff]
        %v2432 = vld [vmem:[%s287 + $0x2c0] sm:$0xff]
        %v2433 = vld [vmem:[%s287 + $0x2c8] sm:$0xff]
        %v2434 = vld [vmem:[%s287 + $0x2d0] sm:$0xff]
        %v2435 = vld [vmem:[%s287 + $0x2d8] sm:$0xff]
        %v2436 = vld [vmem:[%s287 + $0x2e0] sm:$0xff]
        %v2437 = vld [vmem:[%s287 + $0x2e8] sm:$0xff]
        %v2438 = vld [vmem:[%s287 + $0x2f0] sm:$0xff]
        %v2439 = vld [vmem:[%s287 + $0x2f8] sm:$0xff]
        %v2440 = vld [vmem:[%s287 + $0x300] sm:$0xff]
        %v2441 = vld [vmem:[%s287 + $0x308] sm:$0xff]
        %v2442 = vld [vmem:[%s287 + $0x310] sm:$0xff]
        %v2443 = vld [vmem:[%s287 + $0x318] sm:$0xff]
        %v2444 = vld [vmem:[%s287 + $0x320] sm:$0xff]
        %v2445 = vld [vmem:[%s287 + $0x328] sm:$0xff]
        %v2446 = vld [vmem:[%s287 + $0x330] sm:$0xff]
        %v2447 = vld [vmem:[%s287 + $0x338] sm:$0xff]
        %v2448 = vld [vmem:[%s287 + $0x340] sm:$0xff]
        %v2449 = vld [vmem:[%s287 + $0x348] sm:$0xff]
        %v2450 = vld [vmem:[%s287 + $0x350] sm:$0xff]
        %v2451 = vld [vmem:[%s287 + $0x358] sm:$0xff]
        %v2452 = vld [vmem:[%s287 + $0x360] sm:$0xff]
        %v2453 = vld [vmem:[%s287 + $0x368] sm:$0xff]
        %v2454 = vld [vmem:[%s287 + $0x370] sm:$0xff]
        %v2455 = vld [vmem:[%s287 + $0x378] sm:$0xff]
        %v2456 = vld [vmem:[%s287 + $0x380] sm:$0xff]
        %v2457 = vld [vmem:[%s287 + $0x388] sm:$0xff]
        %v2458 = vld [vmem:[%s287 + $0x390] sm:$0xff]
        %v2459 = vld [vmem:[%s287 + $0x398] sm:$0xff]
        %v2460 = vld [vmem:[%s287 + $0x3a0] sm:$0xff]
        %v2461 = vld [vmem:[%s287 + $0x3a8] sm:$0xff]
        %v2462 = vld [vmem:[%s287 + $0x3b0] sm:$0xff]
        %v2463 = vld [vmem:[%s287 + $0x3b8] sm:$0xff]
        %v2464 = vld [vmem:[%s287 + $0x3c0] sm:$0xff]
        %v2465 = vld [vmem:[%s287 + $0x3c8] sm:$0xff]
        %v2466 = vld [vmem:[%s287 + $0x3d0] sm:$0xff]
        %v2467 = vld [vmem:[%s287 + $0x3d8] sm:$0xff]
        %v2468 = vld [vmem:[%s287 + $0x3e0] sm:$0xff]
        %v2469 = vld [vmem:[%s287 + $0x3e8] sm:$0xff]
        %v2470 = vld [vmem:[%s287 + $0x3f0] sm:$0xff]
        %v2471 = vld [vmem:[%s287 + $0x3f8] sm:$0xff]
        %v2472 = vld [vmem:[%s333] sm:$0x3]
        %v2474 = vperm.slane %v2472, 0
        %v2475 = vperm.slane %v2472, 1
        %v2606 = vunpack.c.l.b16 %v2344
        %v2607 = vunpack.c.h.b16 %v2344
        %v2608 = vunpack.c.l.b16 %v2345
        %v2609 = vunpack.c.h.b16 %v2345
        %v2610 = vunpack.c.l.b16 %v2346
        %v2611 = vunpack.c.h.b16 %v2346
        %v2612 = vunpack.c.l.b16 %v2347
        %v2613 = vunpack.c.h.b16 %v2347
        %v2614 = vunpack.c.l.b16 %v2348
        %v2615 = vunpack.c.h.b16 %v2348
        %v2616 = vunpack.c.l.b16 %v2349
        %v2617 = vunpack.c.h.b16 %v2349
        %v2618 = vunpack.c.l.b16 %v2350
        %v2619 = vunpack.c.h.b16 %v2350
        %v2620 = vunpack.c.l.b16 %v2351
        %v2621 = vunpack.c.h.b16 %v2351
        %v2622 = vunpack.c.l.b16 %v2352
        %v2623 = vunpack.c.h.b16 %v2352
        %v2624 = vunpack.c.l.b16 %v2353
        %v2625 = vunpack.c.h.b16 %v2353
        %v2626 = vunpack.c.l.b16 %v2354
        %v2627 = vunpack.c.h.b16 %v2354
        %v2628 = vunpack.c.l.b16 %v2355
        %v2629 = vunpack.c.h.b16 %v2355
        %v2630 = vunpack.c.l.b16 %v2356
        %v2631 = vunpack.c.h.b16 %v2356
        %v2632 = vunpack.c.l.b16 %v2357
        %v2633 = vunpack.c.h.b16 %v2357
        %v2634 = vunpack.c.l.b16 %v2358
        %v2635 = vunpack.c.h.b16 %v2358
        %v2636 = vunpack.c.l.b16 %v2359
        %v2637 = vunpack.c.h.b16 %v2359
        %v2638 = vunpack.c.l.b16 %v2360
        %v2639 = vunpack.c.h.b16 %v2360
        %v2640 = vunpack.c.l.b16 %v2361
        %v2641 = vunpack.c.h.b16 %v2361
        %v2642 = vunpack.c.l.b16 %v2362
        %v2643 = vunpack.c.h.b16 %v2362
        %v2644 = vunpack.c.l.b16 %v2363
        %v2645 = vunpack.c.h.b16 %v2363
        %v2646 = vunpack.c.l.b16 %v2364
        %v2647 = vunpack.c.h.b16 %v2364
        %v2648 = vunpack.c.l.b16 %v2365
        %v2649 = vunpack.c.h.b16 %v2365
        %v2650 = vunpack.c.l.b16 %v2366
        %v2651 = vunpack.c.h.b16 %v2366
        %v2652 = vunpack.c.l.b16 %v2367
        %v2653 = vunpack.c.h.b16 %v2367
        %v2654 = vunpack.c.l.b16 %v2368
        %v2655 = vunpack.c.h.b16 %v2368
        %v2656 = vunpack.c.l.b16 %v2369
        %v2657 = vunpack.c.h.b16 %v2369
        %v2658 = vunpack.c.l.b16 %v2370
        %v2659 = vunpack.c.h.b16 %v2370
        %v2660 = vunpack.c.l.b16 %v2371
        %v2661 = vunpack.c.h.b16 %v2371
        %v2662 = vunpack.c.l.b16 %v2372
        %v2663 = vunpack.c.h.b16 %v2372
        %v2664 = vunpack.c.l.b16 %v2373
        %v2665 = vunpack.c.h.b16 %v2373
        %v2666 = vunpack.c.l.b16 %v2374
        %v2667 = vunpack.c.h.b16 %v2374
        %v2668 = vunpack.c.l.b16 %v2375
        %v2669 = vunpack.c.h.b16 %v2375
        %v2670 = vunpack.c.l.b16 %v2376
        %v2671 = vunpack.c.h.b16 %v2376
        %v2672 = vunpack.c.l.b16 %v2377
        %v2673 = vunpack.c.h.b16 %v2377
        %v2674 = vunpack.c.l.b16 %v2378
        %v2675 = vunpack.c.h.b16 %v2378
        %v2676 = vunpack.c.l.b16 %v2379
        %v2677 = vunpack.c.h.b16 %v2379
        %v2678 = vunpack.c.l.b16 %v2380
        %v2679 = vunpack.c.h.b16 %v2380
        %v2680 = vunpack.c.l.b16 %v2381
        %v2681 = vunpack.c.h.b16 %v2381
        %v2682 = vunpack.c.l.b16 %v2382
        %v2683 = vunpack.c.h.b16 %v2382
        %v2684 = vunpack.c.l.b16 %v2383
        %v2685 = vunpack.c.h.b16 %v2383
        %v2686 = vunpack.c.l.b16 %v2384
        %v2687 = vunpack.c.h.b16 %v2384
        %v2688 = vunpack.c.l.b16 %v2385
        %v2689 = vunpack.c.h.b16 %v2385
        %v2690 = vunpack.c.l.b16 %v2386
        %v2691 = vunpack.c.h.b16 %v2386
        %v2692 = vunpack.c.l.b16 %v2387
        %v2693 = vunpack.c.h.b16 %v2387
        %v2694 = vunpack.c.l.b16 %v2388
        %v2695 = vunpack.c.h.b16 %v2388
        %v2696 = vunpack.c.l.b16 %v2389
        %v2697 = vunpack.c.h.b16 %v2389
        %v2698 = vunpack.c.l.b16 %v2390
        %v2699 = vunpack.c.h.b16 %v2390
        %v2700 = vunpack.c.l.b16 %v2391
        %v2701 = vunpack.c.h.b16 %v2391
        %v2702 = vunpack.c.l.b16 %v2392
        %v2703 = vunpack.c.h.b16 %v2392
        %v2704 = vunpack.c.l.b16 %v2393
        %v2705 = vunpack.c.h.b16 %v2393
        %v2706 = vunpack.c.l.b16 %v2394
        %v2707 = vunpack.c.h.b16 %v2394
        %v2708 = vunpack.c.l.b16 %v2395
        %v2709 = vunpack.c.h.b16 %v2395
        %v2710 = vunpack.c.l.b16 %v2396
        %v2711 = vunpack.c.h.b16 %v2396
        %v2712 = vunpack.c.l.b16 %v2397
        %v2713 = vunpack.c.h.b16 %v2397
        %v2714 = vunpack.c.l.b16 %v2398
        %v2715 = vunpack.c.h.b16 %v2398
        %v2716 = vunpack.c.l.b16 %v2399
        %v2717 = vunpack.c.h.b16 %v2399
        %v2718 = vunpack.c.l.b16 %v2400
        %v2719 = vunpack.c.h.b16 %v2400
        %v2720 = vunpack.c.l.b16 %v2401
        %v2721 = vunpack.c.h.b16 %v2401
        %v2722 = vunpack.c.l.b16 %v2402
        %v2723 = vunpack.c.h.b16 %v2402
        %v2724 = vunpack.c.l.b16 %v2403
        %v2725 = vunpack.c.h.b16 %v2403
        %v2726 = vunpack.c.l.b16 %v2404
        %v2727 = vunpack.c.h.b16 %v2404
        %v2728 = vunpack.c.l.b16 %v2405
        %v2729 = vunpack.c.h.b16 %v2405
        %v2730 = vunpack.c.l.b16 %v2406
        %v2731 = vunpack.c.h.b16 %v2406
        %v2732 = vunpack.c.l.b16 %v2407
        %v2733 = vunpack.c.h.b16 %v2407
        %v2734 = vunpack.c.l.b16 %v2408
        %v2735 = vunpack.c.h.b16 %v2408
        %v2736 = vunpack.c.l.b16 %v2409
        %v2737 = vunpack.c.h.b16 %v2409
        %v2738 = vunpack.c.l.b16 %v2410
        %v2739 = vunpack.c.h.b16 %v2410
        %v2740 = vunpack.c.l.b16 %v2411
        %v2741 = vunpack.c.h.b16 %v2411
        %v2742 = vunpack.c.l.b16 %v2412
        %v2743 = vunpack.c.h.b16 %v2412
        %v2744 = vunpack.c.l.b16 %v2413
        %v2745 = vunpack.c.h.b16 %v2413
        %v2746 = vunpack.c.l.b16 %v2414
        %v2747 = vunpack.c.h.b16 %v2414
        %v2748 = vunpack.c.l.b16 %v2415
        %v2749 = vunpack.c.h.b16 %v2415
        %v2750 = vunpack.c.l.b16 %v2416
        %v2751 = vunpack.c.h.b16 %v2416
        %v2752 = vunpack.c.l.b16 %v2417
        %v2753 = vunpack.c.h.b16 %v2417
        %v2754 = vunpack.c.l.b16 %v2418
        %v2755 = vunpack.c.h.b16 %v2418
        %v2756 = vunpack.c.l.b16 %v2419
        %v2757 = vunpack.c.h.b16 %v2419
        %v2758 = vunpack.c.l.b16 %v2420
        %v2759 = vunpack.c.h.b16 %v2420
        %v2760 = vunpack.c.l.b16 %v2421
        %v2761 = vunpack.c.h.b16 %v2421
        %v2762 = vunpack.c.l.b16 %v2422
        %v2763 = vunpack.c.h.b16 %v2422
        %v2764 = vunpack.c.l.b16 %v2423
        %v2765 = vunpack.c.h.b16 %v2423
        %v2766 = vunpack.c.l.b16 %v2424
        %v2767 = vunpack.c.h.b16 %v2424
        %v2768 = vunpack.c.l.b16 %v2425
        %v2769 = vunpack.c.h.b16 %v2425
        %v2770 = vunpack.c.l.b16 %v2426
        %v2771 = vunpack.c.h.b16 %v2426
        %v2772 = vunpack.c.l.b16 %v2427
        %v2773 = vunpack.c.h.b16 %v2427
        %v2774 = vunpack.c.l.b16 %v2428
        %v2775 = vunpack.c.h.b16 %v2428
        %v2776 = vunpack.c.l.b16 %v2429
        %v2777 = vunpack.c.h.b16 %v2429
        %v2778 = vunpack.c.l.b16 %v2430
        %v2779 = vunpack.c.h.b16 %v2430
        %v2780 = vunpack.c.l.b16 %v2431
        %v2781 = vunpack.c.h.b16 %v2431
        %v2782 = vunpack.c.l.b16 %v2432
        %v2783 = vunpack.c.h.b16 %v2432
        %v2784 = vunpack.c.l.b16 %v2433
        %v2785 = vunpack.c.h.b16 %v2433
        %v2786 = vunpack.c.l.b16 %v2434
        %v2787 = vunpack.c.h.b16 %v2434
        %v2788 = vunpack.c.l.b16 %v2435
        %v2789 = vunpack.c.h.b16 %v2435
        %v2790 = vunpack.c.l.b16 %v2436
        %v2791 = vunpack.c.h.b16 %v2436
        %v2792 = vunpack.c.l.b16 %v2437
        %v2793 = vunpack.c.h.b16 %v2437
        %v2794 = vunpack.c.l.b16 %v2438
        %v2795 = vunpack.c.h.b16 %v2438
        %v2796 = vunpack.c.l.b16 %v2439
        %v2797 = vunpack.c.h.b16 %v2439
        %v2798 = vunpack.c.l.b16 %v2440
        %v2799 = vunpack.c.h.b16 %v2440
        %v2800 = vunpack.c.l.b16 %v2441
        %v2801 = vunpack.c.h.b16 %v2441
        %v2802 = vunpack.c.l.b16 %v2442
        %v2803 = vunpack.c.h.b16 %v2442
        %v2804 = vunpack.c.l.b16 %v2443
        %v2805 = vunpack.c.h.b16 %v2443
        %v2806 = vunpack.c.l.b16 %v2444
        %v2807 = vunpack.c.h.b16 %v2444
        %v2808 = vunpack.c.l.b16 %v2445
        %v2809 = vunpack.c.h.b16 %v2445
        %v2810 = vunpack.c.l.b16 %v2446
        %v2811 = vunpack.c.h.b16 %v2446
        %v2812 = vunpack.c.l.b16 %v2447
        %v2813 = vunpack.c.h.b16 %v2447
        %v2814 = vunpack.c.l.b16 %v2448
        %v2815 = vunpack.c.h.b16 %v2448
        %v2816 = vunpack.c.l.b16 %v2449
        %v2817 = vunpack.c.h.b16 %v2449
        %v2818 = vunpack.c.l.b16 %v2450
        %v2819 = vunpack.c.h.b16 %v2450
        %v2820 = vunpack.c.l.b16 %v2451
        %v2821 = vunpack.c.h.b16 %v2451
        %v2822 = vunpack.c.l.b16 %v2452
        %v2823 = vunpack.c.h.b16 %v2452
        %v2824 = vunpack.c.l.b16 %v2453
        %v2825 = vunpack.c.h.b16 %v2453
        %v2826 = vunpack.c.l.b16 %v2454
        %v2827 = vunpack.c.h.b16 %v2454
        %v2828 = vunpack.c.l.b16 %v2455
        %v2829 = vunpack.c.h.b16 %v2455
        %v2830 = vunpack.c.l.b16 %v2456
        %v2831 = vunpack.c.h.b16 %v2456
        %v2832 = vunpack.c.l.b16 %v2457
        %v2833 = vunpack.c.h.b16 %v2457
        %v2834 = vunpack.c.l.b16 %v2458
        %v2835 = vunpack.c.h.b16 %v2458
        %v2836 = vunpack.c.l.b16 %v2459
        %v2837 = vunpack.c.h.b16 %v2459
        %v2838 = vunpack.c.l.b16 %v2460
        %v2839 = vunpack.c.h.b16 %v2460
        %v2840 = vunpack.c.l.b16 %v2461
        %v2841 = vunpack.c.h.b16 %v2461
        %v2842 = vunpack.c.l.b16 %v2462
        %v2843 = vunpack.c.h.b16 %v2462
        %v2844 = vunpack.c.l.b16 %v2463
        %v2845 = vunpack.c.h.b16 %v2463
        %v2846 = vunpack.c.l.b16 %v2464
        %v2847 = vunpack.c.h.b16 %v2464
        %v2848 = vunpack.c.l.b16 %v2465
        %v2849 = vunpack.c.h.b16 %v2465
        %v2850 = vunpack.c.l.b16 %v2466
        %v2851 = vunpack.c.h.b16 %v2466
        %v2852 = vunpack.c.l.b16 %v2467
        %v2853 = vunpack.c.h.b16 %v2467
        %v2854 = vunpack.c.l.b16 %v2468
        %v2855 = vunpack.c.h.b16 %v2468
        %v2856 = vunpack.c.l.b16 %v2469
        %v2857 = vunpack.c.h.b16 %v2469
        %v2858 = vunpack.c.l.b16 %v2470
        %v2859 = vunpack.c.h.b16 %v2470
        %v2860 = vunpack.c.l.b16 %v2471
        %v2861 = vunpack.c.h.b16 %v2471
        %v2862 = vpack.c.b16 %v2608, %v2606
        %v2863 = vpack.c.b16 %v2609, %v2607
        %v2864 = vpack.c.b16 %v2612, %v2610
        %v2865 = vpack.c.b16 %v2613, %v2611
        %v2866 = vpack.c.b16 %v2616, %v2614
        %v2867 = vpack.c.b16 %v2617, %v2615
        %v2868 = vpack.c.b16 %v2620, %v2618
        %v2869 = vpack.c.b16 %v2621, %v2619
        %v2870 = vpack.c.b16 %v2624, %v2622
        %v2871 = vpack.c.b16 %v2625, %v2623
        %v2872 = vpack.c.b16 %v2628, %v2626
        %v2873 = vpack.c.b16 %v2629, %v2627
        %v2874 = vpack.c.b16 %v2632, %v2630
        %v2875 = vpack.c.b16 %v2633, %v2631
        %v2876 = vpack.c.b16 %v2636, %v2634
        %v2877 = vpack.c.b16 %v2637, %v2635
        %v2878 = vpack.c.b16 %v2640, %v2638
        %v2879 = vpack.c.b16 %v2641, %v2639
        %v2880 = vpack.c.b16 %v2644, %v2642
        %v2881 = vpack.c.b16 %v2645, %v2643
        %v2882 = vpack.c.b16 %v2648, %v2646
        %v2883 = vpack.c.b16 %v2649, %v2647
        %v2884 = vpack.c.b16 %v2652, %v2650
        %v2885 = vpack.c.b16 %v2653, %v2651
        %v2886 = vpack.c.b16 %v2656, %v2654
        %v2887 = vpack.c.b16 %v2657, %v2655
        %v2888 = vpack.c.b16 %v2660, %v2658
        %v2889 = vpack.c.b16 %v2661, %v2659
        %v2890 = vpack.c.b16 %v2664, %v2662
        %v2891 = vpack.c.b16 %v2665, %v2663
        %v2892 = vpack.c.b16 %v2668, %v2666
        %v2893 = vpack.c.b16 %v2669, %v2667
        %v2894 = vpack.c.b16 %v2672, %v2670
        %v2895 = vpack.c.b16 %v2673, %v2671
        %v2896 = vpack.c.b16 %v2676, %v2674
        %v2897 = vpack.c.b16 %v2677, %v2675
        %v2898 = vpack.c.b16 %v2680, %v2678
        %v2899 = vpack.c.b16 %v2681, %v2679
        %v2900 = vpack.c.b16 %v2684, %v2682
        %v2901 = vpack.c.b16 %v2685, %v2683
        %v2902 = vpack.c.b16 %v2688, %v2686
        %v2903 = vpack.c.b16 %v2689, %v2687
        %v2904 = vpack.c.b16 %v2692, %v2690
        %v2905 = vpack.c.b16 %v2693, %v2691
        %v2906 = vpack.c.b16 %v2696, %v2694
        %v2907 = vpack.c.b16 %v2697, %v2695
        %v2908 = vpack.c.b16 %v2700, %v2698
        %v2909 = vpack.c.b16 %v2701, %v2699
        %v2910 = vpack.c.b16 %v2704, %v2702
        %v2911 = vpack.c.b16 %v2705, %v2703
        %v2912 = vpack.c.b16 %v2708, %v2706
        %v2913 = vpack.c.b16 %v2709, %v2707
        %v2914 = vpack.c.b16 %v2712, %v2710
        %v2915 = vpack.c.b16 %v2713, %v2711
        %v2916 = vpack.c.b16 %v2716, %v2714
        %v2917 = vpack.c.b16 %v2717, %v2715
        %v2918 = vpack.c.b16 %v2720, %v2718
        %v2919 = vpack.c.b16 %v2721, %v2719
        %v2920 = vpack.c.b16 %v2724, %v2722
        %v2921 = vpack.c.b16 %v2725, %v2723
        %v2922 = vpack.c.b16 %v2728, %v2726
        %v2923 = vpack.c.b16 %v2729, %v2727
        %v2924 = vpack.c.b16 %v2732, %v2730
        %v2925 = vpack.c.b16 %v2733, %v2731
        %v2926 = vpack.c.b16 %v2736, %v2734
        %v2927 = vpack.c.b16 %v2737, %v2735
        %v2928 = vpack.c.b16 %v2740, %v2738
        %v2929 = vpack.c.b16 %v2741, %v2739
        %v2930 = vpack.c.b16 %v2744, %v2742
        %v2931 = vpack.c.b16 %v2745, %v2743
        %v2932 = vpack.c.b16 %v2748, %v2746
        %v2933 = vpack.c.b16 %v2749, %v2747
        %v2934 = vpack.c.b16 %v2752, %v2750
        %v2935 = vpack.c.b16 %v2753, %v2751
        %v2936 = vpack.c.b16 %v2756, %v2754
        %v2937 = vpack.c.b16 %v2757, %v2755
        %v2938 = vpack.c.b16 %v2760, %v2758
        %v2939 = vpack.c.b16 %v2761, %v2759
        %v2940 = vpack.c.b16 %v2764, %v2762
        %v2941 = vpack.c.b16 %v2765, %v2763
        %v2942 = vpack.c.b16 %v2768, %v2766
        %v2943 = vpack.c.b16 %v2769, %v2767
        %v2944 = vpack.c.b16 %v2772, %v2770
        %v2945 = vpack.c.b16 %v2773, %v2771
        %v2946 = vpack.c.b16 %v2776, %v2774
        %v2947 = vpack.c.b16 %v2777, %v2775
        %v2948 = vpack.c.b16 %v2780, %v2778
        %v2949 = vpack.c.b16 %v2781, %v2779
        %v2950 = vpack.c.b16 %v2784, %v2782
        %v2951 = vpack.c.b16 %v2785, %v2783
        %v2952 = vpack.c.b16 %v2788, %v2786
        %v2953 = vpack.c.b16 %v2789, %v2787
        %v2954 = vpack.c.b16 %v2792, %v2790
        %v2955 = vpack.c.b16 %v2793, %v2791
        %v2956 = vpack.c.b16 %v2796, %v2794
        %v2957 = vpack.c.b16 %v2797, %v2795
        %v2958 = vpack.c.b16 %v2800, %v2798
        %v2959 = vpack.c.b16 %v2801, %v2799
        %v2960 = vpack.c.b16 %v2804, %v2802
        %v2961 = vpack.c.b16 %v2805, %v2803
        %v2962 = vpack.c.b16 %v2808, %v2806
        %v2963 = vpack.c.b16 %v2809, %v2807
        %v2964 = vpack.c.b16 %v2812, %v2810
        %v2965 = vpack.c.b16 %v2813, %v2811
        %v2966 = vpack.c.b16 %v2816, %v2814
        %v2967 = vpack.c.b16 %v2817, %v2815
        %v2968 = vpack.c.b16 %v2820, %v2818
        %v2969 = vpack.c.b16 %v2821, %v2819
        %v2970 = vpack.c.b16 %v2824, %v2822
        %v2971 = vpack.c.b16 %v2825, %v2823
        %v2972 = vpack.c.b16 %v2828, %v2826
        %v2973 = vpack.c.b16 %v2829, %v2827
        %v2974 = vpack.c.b16 %v2832, %v2830
        %v2975 = vpack.c.b16 %v2833, %v2831
        %v2976 = vpack.c.b16 %v2836, %v2834
        %v2977 = vpack.c.b16 %v2837, %v2835
        %v2978 = vpack.c.b16 %v2840, %v2838
        %v2979 = vpack.c.b16 %v2841, %v2839
        %v2980 = vpack.c.b16 %v2844, %v2842
        %v2981 = vpack.c.b16 %v2845, %v2843
        %v2982 = vpack.c.b16 %v2848, %v2846
        %v2983 = vpack.c.b16 %v2849, %v2847
        %v2984 = vpack.c.b16 %v2852, %v2850
        %v2985 = vpack.c.b16 %v2853, %v2851
        %v2986 = vpack.c.b16 %v2856, %v2854
        %v2987 = vpack.c.b16 %v2857, %v2855
        %v2988 = vpack.c.b16 %v2860, %v2858
        %v2989 = vpack.c.b16 %v2861, %v2859
        %3118 = vmatpush.bf16.msra.mxu0 %v2876
        %3119 = vmatpush.bf16.msra.mxu0 %v2874
        %3120 = vmatpush.bf16.msra.mxu0 %v2872
        %3121 = vmatpush.bf16.msra.mxu0 %v2870
        %3122 = vmatpush.bf16.msra.mxu0 %v2868
        %3123 = vmatpush.bf16.msra.mxu0 %v2866
        %3124 = vmatpush.bf16.msra.mxu0 %v2864
        %3125 = vmatpush.bf16.msra.mxu0 %v2862
        %3126 = vmatmul.bf16.gmra.mxu0 %v2336
        %v3127 = vpop.f32.mrf.mxu0
        %v3128 = vadd.f32 %v2474, %v3127
        %v3129 = vpop.f32.mrf.mxu0
        %3130 = vdwg.mxu0
        %3131 = vmatpush.bf16.msra.mxu0 %v2892
        %3132 = vmatpush.bf16.msra.mxu0 %v2890
        %3133 = vmatpush.bf16.msra.mxu0 %v2888
        %3134 = vmatpush.bf16.msra.mxu0 %v2886
        %3135 = vmatpush.bf16.msra.mxu0 %v2884
        %3136 = vmatpush.bf16.msra.mxu0 %v2882
        %3137 = vmatpush.bf16.msra.mxu0 %v2880
        %3138 = vmatpush.bf16.msra.mxu0 %v2878
        %3139 = vmatmul.bf16.gmra.mxu0 %v2337
        %v3140 = vpop.f32.mrf.mxu0
        %v3141 = vadd.f32 %v3128, %v3140
        %v3142 = vpop.f32.mrf.mxu0
        %3143 = vdwg.mxu0
        %3144 = vmatpush.bf16.msra.mxu0 %v2908
        %3145 = vmatpush.bf16.msra.mxu0 %v2906
        %3146 = vmatpush.bf16.msra.mxu0 %v2904
        %3147 = vmatpush.bf16.msra.mxu0 %v2902
        %3148 = vmatpush.bf16.msra.mxu0 %v2900
        %3149 = vmatpush.bf16.msra.mxu0 %v2898
        %3150 = vmatpush.bf16.msra.mxu0 %v2896
        %3151 = vmatpush.bf16.msra.mxu0 %v2894
        %3152 = vmatmul.bf16.gmra.mxu0 %v2338
        %v3153 = vpop.f32.mrf.mxu0
        %v3154 = vadd.f32 %v3141, %v3153
        %v3155 = vpop.f32.mrf.mxu0
        %3156 = vdwg.mxu0
        %3157 = vmatpush.bf16.msra.mxu0 %v2924
        %3158 = vmatpush.bf16.msra.mxu0 %v2922
        %3159 = vmatpush.bf16.msra.mxu0 %v2920
        %3160 = vmatpush.bf16.msra.mxu0 %v2918
        %3161 = vmatpush.bf16.msra.mxu0 %v2916
        %3162 = vmatpush.bf16.msra.mxu0 %v2914
        %3163 = vmatpush.bf16.msra.mxu0 %v2912
        %3164 = vmatpush.bf16.msra.mxu0 %v2910
        %3165 = vmatmul.bf16.gmra.mxu0 %v2339
        %v3166 = vpop.f32.mrf.mxu0
        %v3167 = vadd.f32 %v3154, %v3166
        %v3168 = vpop.f32.mrf.mxu0
        %3169 = vdwg.mxu0
        %3170 = vmatpush.bf16.msra.mxu0 %v2940
        %3171 = vmatpush.bf16.msra.mxu0 %v2938
        %3172 = vmatpush.bf16.msra.mxu0 %v2936
        %3173 = vmatpush.bf16.msra.mxu0 %v2934
        %3174 = vmatpush.bf16.msra.mxu0 %v2932
        %3175 = vmatpush.bf16.msra.mxu0 %v2930
        %3176 = vmatpush.bf16.msra.mxu0 %v2928
        %3177 = vmatpush.bf16.msra.mxu0 %v2926
        %3178 = vmatmul.bf16.gmra.mxu0 %v2340
        %v3179 = vpop.f32.mrf.mxu0
        %v3180 = vadd.f32 %v3167, %v3179
        %v3181 = vpop.f32.mrf.mxu0
        %3182 = vdwg.mxu0
        %3183 = vmatpush.bf16.msra.mxu0 %v2956
        %3184 = vmatpush.bf16.msra.mxu0 %v2954
        %3185 = vmatpush.bf16.msra.mxu0 %v2952
        %3186 = vmatpush.bf16.msra.mxu0 %v2950
        %3187 = vmatpush.bf16.msra.mxu0 %v2948
        %3188 = vmatpush.bf16.msra.mxu0 %v2946
        %3189 = vmatpush.bf16.msra.mxu0 %v2944
        %3190 = vmatpush.bf16.msra.mxu0 %v2942
        %3191 = vmatmul.bf16.gmra.mxu0 %v2341
        %v3192 = vpop.f32.mrf.mxu0
        %v3193 = vadd.f32 %v3180, %v3192
        %v3194 = vpop.f32.mrf.mxu0
        %3195 = vdwg.mxu0
        %3196 = vmatpush.bf16.msra.mxu0 %v2972
        %3197 = vmatpush.bf16.msra.mxu0 %v2970
        %3198 = vmatpush.bf16.msra.mxu0 %v2968
        %3199 = vmatpush.bf16.msra.mxu0 %v2966
        %3200 = vmatpush.bf16.msra.mxu0 %v2964
        %3201 = vmatpush.bf16.msra.mxu0 %v2962
        %3202 = vmatpush.bf16.msra.mxu0 %v2960
        %3203 = vmatpush.bf16.msra.mxu0 %v2958
        %3204 = vmatmul.bf16.gmra.mxu0 %v2342
        %v3205 = vpop.f32.mrf.mxu0
        %v3206 = vadd.f32 %v3193, %v3205
        %v3207 = vpop.f32.mrf.mxu0
        %3208 = vdwg.mxu0
        %3209 = vmatpush.bf16.msra.mxu0 %v2988
        %3210 = vmatpush.bf16.msra.mxu0 %v2986
        %3211 = vmatpush.bf16.msra.mxu0 %v2984
        %3212 = vmatpush.bf16.msra.mxu0 %v2982
        %3213 = vmatpush.bf16.msra.mxu0 %v2980
        %3214 = vmatpush.bf16.msra.mxu0 %v2978
        %3215 = vmatpush.bf16.msra.mxu0 %v2976
        %3216 = vmatpush.bf16.msra.mxu0 %v2974
        %3217 = vmatmul.bf16.gmra.mxu0 %v2343
        %v3218 = vpop.f32.mrf.mxu0
        %v3219 = vadd.f32 %v3206, %v3218
        %v3220 = vpop.f32.mrf.mxu0
        %3221 = vdwg.mxu0
        %3222 = vmatpush.bf16.msra.mxu0 %v2877
        %3223 = vmatpush.bf16.msra.mxu0 %v2875
        %3224 = vmatpush.bf16.msra.mxu0 %v2873
        %3225 = vmatpush.bf16.msra.mxu0 %v2871
        %3226 = vmatpush.bf16.msra.mxu0 %v2869
        %3227 = vmatpush.bf16.msra.mxu0 %v2867
        %3228 = vmatpush.bf16.msra.mxu0 %v2865
        %3229 = vmatpush.bf16.msra.mxu0 %v2863
        %3230 = vmatmul.bf16.gmra.mxu0 %v2336
        %v3231 = vpop.f32.mrf.mxu0
        %v3232 = vadd.f32 %v2475, %v3231
        %v3233 = vpop.f32.mrf.mxu0
        %3234 = vdwg.mxu0
        %3235 = vmatpush.bf16.msra.mxu0 %v2893
        %3236 = vmatpush.bf16.msra.mxu0 %v2891
        %3237 = vmatpush.bf16.msra.mxu0 %v2889
        %3238 = vmatpush.bf16.msra.mxu0 %v2887
        %3239 = vmatpush.bf16.msra.mxu0 %v2885
        %3240 = vmatpush.bf16.msra.mxu0 %v2883
        %3241 = vmatpush.bf16.msra.mxu0 %v2881
        %3242 = vmatpush.bf16.msra.mxu0 %v2879
        %3243 = vmatmul.bf16.gmra.mxu0 %v2337
        %v3244 = vpop.f32.mrf.mxu0
        %v3245 = vadd.f32 %v3232, %v3244
        %v3246 = vpop.f32.mrf.mxu0
        %3247 = vdwg.mxu0
        %3248 = vmatpush.bf16.msra.mxu0 %v2909
        %3249 = vmatpush.bf16.msra.mxu0 %v2907
        %3250 = vmatpush.bf16.msra.mxu0 %v2905
        %3251 = vmatpush.bf16.msra.mxu0 %v2903
        %3252 = vmatpush.bf16.msra.mxu0 %v2901
        %3253 = vmatpush.bf16.msra.mxu0 %v2899
        %3254 = vmatpush.bf16.msra.mxu0 %v2897
        %3255 = vmatpush.bf16.msra.mxu0 %v2895
        %3256 = vmatmul.bf16.gmra.mxu0 %v2338
        %v3257 = vpop.f32.mrf.mxu0
        %v3258 = vadd.f32 %v3245, %v3257
        %v3259 = vpop.f32.mrf.mxu0
        %3260 = vdwg.mxu0
        %3261 = vmatpush.bf16.msra.mxu0 %v2925
        %3262 = vmatpush.bf16.msra.mxu0 %v2923
        %3263 = vmatpush.bf16.msra.mxu0 %v2921
        %3264 = vmatpush.bf16.msra.mxu0 %v2919
        %3265 = vmatpush.bf16.msra.mxu0 %v2917
        %3266 = vmatpush.bf16.msra.mxu0 %v2915
        %3267 = vmatpush.bf16.msra.mxu0 %v2913
        %3268 = vmatpush.bf16.msra.mxu0 %v2911
        %3269 = vmatmul.bf16.gmra.mxu0 %v2339
        %v3270 = vpop.f32.mrf.mxu0
        %v3271 = vadd.f32 %v3258, %v3270
        %v3272 = vpop.f32.mrf.mxu0
        %3273 = vdwg.mxu0
        %3274 = vmatpush.bf16.msra.mxu0 %v2941
        %3275 = vmatpush.bf16.msra.mxu0 %v2939
        %3276 = vmatpush.bf16.msra.mxu0 %v2937
        %3277 = vmatpush.bf16.msra.mxu0 %v2935
        %3278 = vmatpush.bf16.msra.mxu0 %v2933
        %3279 = vmatpush.bf16.msra.mxu0 %v2931
        %3280 = vmatpush.bf16.msra.mxu0 %v2929
        %3281 = vmatpush.bf16.msra.mxu0 %v2927
        %3282 = vmatmul.bf16.gmra.mxu0 %v2340
        %v3283 = vpop.f32.mrf.mxu0
        %v3284 = vadd.f32 %v3271, %v3283
        %v3285 = vpop.f32.mrf.mxu0
        %3286 = vdwg.mxu0
        %3287 = vmatpush.bf16.msra.mxu0 %v2957
        %3288 = vmatpush.bf16.msra.mxu0 %v2955
        %3289 = vmatpush.bf16.msra.mxu0 %v2953
        %3290 = vmatpush.bf16.msra.mxu0 %v2951
        %3291 = vmatpush.bf16.msra.mxu0 %v2949
        %3292 = vmatpush.bf16.msra.mxu0 %v2947
        %3293 = vmatpush.bf16.msra.mxu0 %v2945
        %3294 = vmatpush.bf16.msra.mxu0 %v2943
        %3295 = vmatmul.bf16.gmra.mxu0 %v2341
        %v3296 = vpop.f32.mrf.mxu0
        %v3297 = vadd.f32 %v3284, %v3296
        %v3298 = vpop.f32.mrf.mxu0
        %3299 = vdwg.mxu0
        %3300 = vmatpush.bf16.msra.mxu0 %v2973
        %3301 = vmatpush.bf16.msra.mxu0 %v2971
        %3302 = vmatpush.bf16.msra.mxu0 %v2969
        %3303 = vmatpush.bf16.msra.mxu0 %v2967
        %3304 = vmatpush.bf16.msra.mxu0 %v2965
        %3305 = vmatpush.bf16.msra.mxu0 %v2963
        %3306 = vmatpush.bf16.msra.mxu0 %v2961
        %3307 = vmatpush.bf16.msra.mxu0 %v2959
        %3308 = vmatmul.bf16.gmra.mxu0 %v2342
        %v3309 = vpop.f32.mrf.mxu0
        %v3310 = vadd.f32 %v3297, %v3309
        %v3311 = vpop.f32.mrf.mxu0
        %3312 = vdwg.mxu0
        %3313 = vmatpush.bf16.msra.mxu0 %v2989
        %3314 = vmatpush.bf16.msra.mxu0 %v2987
        %3315 = vmatpush.bf16.msra.mxu0 %v2985
        %3316 = vmatpush.bf16.msra.mxu0 %v2983
        %3317 = vmatpush.bf16.msra.mxu0 %v2981
        %3318 = vmatpush.bf16.msra.mxu0 %v2979
        %3319 = vmatpush.bf16.msra.mxu0 %v2977
        %3320 = vmatpush.bf16.msra.mxu0 %v2975
        %3321 = vmatmul.bf16.gmra.mxu0 %v2343
        %v3322 = vpop.f32.mrf.mxu0
        %v3323 = vadd.f32 %v3310, %v3322
        %v3324 = vpop.f32.mrf.mxu0
        %3325 = vdwg.mxu0
        %v3328 = vrot.slane %v3323, 6
        %vm3329 = vcmask 1041408
        %v3330 = vsel %vm3329, %v3219, %v3328
        %3332 = vst [vmem:[%s321] sm:$0xf] %v3330
        %s3333 = sand.u32 %s147, 1
        %s3334 = scalar_lea.sflag [#allocation4], %s3333
        %s3335 = sand.u32 %s147, 1
        %s3336 = smul.addr %s3335, 4
        %s3337 = scalar_lea.vmem [#allocation10], %s3336
        // Predicated region
        $region57: #{tpu_custom_call.1} parent=39 // pred_check
          %p3338 = pneg %p157
        $region58: #{tpu_custom_call.1} parent=39 // pred_check_branch
          %3340 = sbr.rel (%p3338) target = $region60
        $region59: #{tpu_custom_call.1} parent=39 // pred_region
          %s3341 = smul.u32 2, %s24
          %s3342 = ssub.s32 3, %s3341
          %p3343 = scmp.lt.s32.totalorder %s3342, 2
          %s3344 = scalar_select %p3343, %s3342, 2
          %s3345 = smul.u32 2, %s3344
          %s3346 = ssub.s32 4, %s3345
          %s3347 = sshll.u32 %s3346, 4
          %3348 = vsyncadd %s3334, %s3347
          %p3349 = scmp.ne.s32.totalorder 0, %s3345
          %s3350 = smul.addr %s3341, 2
          %s3351 = scalar_lea.hbm %s5, %s3350
          %s3352 = smul.u32 %s3344, 2
          %s3353 = sshll.u32 %s3352, 4
          %s3354 = sshll.u32 %s3337, 4
          %s3355 = int_to_ptr.vmem [resolvable:$true] %s3354
          %s3356 = sshll.u32 %s3351, 4
          %s3357 = int_to_ptr.hbm [resolvable:$true] %s3356
          %3359 = dma.vmem_to_hbm [thread:$0]  (%p3349), %s3355, %s3353, %s3357, %s3334
        $region60: #{tpu_custom_call.1} parent=39 // pred_fallthru
          _
      $region40: #{tpu_custom_call.1} parent=5 // pred_fallthru
        _
      %p3360 = scmp.le.s32.totalorder 2, %s19
      // Predicated region
      $region61: #{tpu_custom_call.1} parent=5 // pred_check
        %p3361 = pneg %p3360
      $region62: #{tpu_custom_call.1} parent=5 // pred_check_branch
        %3363 = sbr.rel (%p3361) target = $region64
      $region63: #{tpu_custom_call.1} parent=5 // pred_region
        %s3364 = ssub.s32 %s19, 2
        // Predicated region
        $region65: #{tpu_custom_call.1} parent=63 // pred_check
          %p3365 = pneg %p163
        $region66: #{tpu_custom_call.1} parent=63 // pred_check_branch
          %3367 = sbr.rel (%p3365) target = $region68
        $region67: #{tpu_custom_call.1} parent=63 // pred_region
          %s3368 = sand.u32 %s148, 1
          %s3369 = scalar_lea.sflag [#allocation4], %s3368
          %s3370 = sand.u32 %s148, 1
          %s3371 = smul.addr %s3370, 4
          %s3372 = scalar_lea.vmem [#allocation10], %s3371
          %3374 = dma.done %s3369, 64
        $region68: #{tpu_custom_call.1} parent=63 // pred_fallthru
          _
      $region64: #{tpu_custom_call.1} parent=5 // pred_fallthru
        _
    $region6: #{tpu_custom_call.1} parent=1 // loop_footer
      %s23 = sadd.s32 1, %s19
    $region7: #{tpu_custom_call.1} parent=1 // loop_footer_branch
      %18 = sbr.rel target = $region3
    $region8: #{tpu_custom_call.1} parent=1 // loop_exit
      _
    %3375 = vsyncpa [#allocation3], 1
    %s3376 = scalar_lea.sflag [#allocation3], 1
    %3377 = vsyncpa %s3376, 1
    %3378 = vsyncpa [#allocation6], 1
    %3379 = vsyncpa [#allocation9], 1
    %s3380 = scalar_lea.sflag [#allocation9], 1
    %3381 = vsyncpa %s3380, 1
    %3382 = vsyncpa [#allocation4], 1
    %s3383 = scalar_lea.sflag [#allocation4], 1
    %3384 = vsyncpa %s3383, 1

</llo_original>
